<compile_context>
chip_gen: v6e
topology: v6e:2x2x1
jax: 0.10.0
libtpu: 0.0.40
codegen_flags: <defaults>
</compile_context>

<pallas_src>
import jax
import jax.numpy as jnp
from jax import lax
from jax.experimental import pallas as pl
from jax.experimental.pallas import tpu as pltpu


def _default_vmem_limit_bytes():
    # ~75% of physical VMEM, capped at 100 MiB (v5e/v6e: 128 MiB, v7x: 64 MiB per TC).
    cap = 64 * 1024 * 1024
    try:
        info = pltpu.get_tpu_info()
        cap = int(getattr(info, "vmem_capacity_bytes", cap))
    except Exception:
        pass
    return int(min(cap * 3 // 4, 100 * 1024 * 1024))


_VMEM_LIMIT_BYTES = _default_vmem_limit_bytes()


def _bilstm_kernel(xp_ref, wih_ref, whh_ref, b_ref, out_ref, hn_ref, cn_ref, gx_ref):
    """Whole bidirectional LSTM recurrence in one kernel invocation.

    xp_ref : (T, B, 2*In) f32   [x[t] | x[T-1-t]] paired along features (built in wrapper)
    wih_ref: (2*In, 8H)   bf16  fused input weights, gate-major columns, 0.5-scaled i/f/o
    whh_ref: (2H, 8H)     bf16  fused recurrent weights (rows: fwd h | bwd h), gate-major
    b_ref  : (1, 8H)      f32   fused bias (bias_ih + bias_hh), gate-major, pre-scaled
    out_ref: (T, B, 2H)   f32   forward hidden states in [..., :H], backward in [..., H:]
    hn_ref : (B, 2H)      f32   final hidden state (fwd | bwd)
    cn_ref : (B, 2H)      f32   final cell state   (fwd | bwd)
    gx_ref : (T, B, 8H)   bf16  VMEM scratch: hoisted input projection + bias

    Gate-major column layout: [i_f i_b | f_f f_b | g_f g_b | o_f o_b], each block H wide,
    so every gate slice of the fused (B, 8H) gate block is contiguous and in fwd|bwd order.
    """
    T, B, In2 = xp_ref.shape
    H2 = whh_ref.shape[0]          # 2H  (fwd | bwd)
    H = H2 // 2

    # --- Hoisted input projection for both directions / both time orders: one MXU matmul ---
    xp2d = xp_ref[...].reshape(T * B, In2).astype(jnp.bfloat16)
    gx = jnp.dot(xp2d, wih_ref[...], preferred_element_type=jnp.float32) + b_ref[...]
    gx_ref[...] = gx.reshape(T, B, 4 * H2).astype(jnp.bfloat16)

    whh = whh_ref[...]

    def step(t, carry):
        h, c = carry               # (B, 2H) f32, layout fwd | bwd
        # One fused recurrent matmul + one contiguous gx-row read per step.
        gates = gx_ref[t] + jnp.dot(h.astype(jnp.bfloat16), whh,
                                    preferred_element_type=jnp.float32)
        tg = jnp.tanh(gates)       # single EUP pass over all 8H gate columns
        sg = 0.5 * tg + 0.5        # == sigmoid(original i/f/o pre-activations)
        i = sg[:, 0 * H2:1 * H2]
        f = sg[:, 1 * H2:2 * H2]
        g = tg[:, 2 * H2:3 * H2]
        o = sg[:, 3 * H2:4 * H2]
        c_new = f * c + i * g
        h_new = o * jnp.tanh(c_new)
        # Forward half belongs to output time t, backward half to time T-1-t.
        out_ref[t, :, 0:H] = h_new[:, 0:H]
        out_ref[T - 1 - t, :, H:H2] = h_new[:, H:H2]
        return (h_new, c_new)

    z = jnp.zeros((B, H2), jnp.float32)
    h, c = lax.fori_loop(0, T, step, (z, z), unroll=True if T <= 16 else 4)

    hn_ref[...] = h
    cn_ref[...] = c


@jax.jit
def lstm_encoder_forward(x, prepped):
    """Pallas-backed equivalent of lstm_encoder.forward (bidirectional=True)."""
    T, B, In = x.shape
    H2 = prepped["whh"].shape[0]   # 2H
    H = H2 // 2
    f32 = jnp.float32

    # bf16 MXU LHS packs [16, 128] sublanes per vreg -> pad batch to a multiple of 16.
    B_pad = max(16, -(-B // 16) * 16)

    # Pair x[t] with x[T-1-t] along features so the single fused input-projection matmul
    # produces both directions' time-correct gate pre-activations, already gate-major.
    x_pair = jnp.concatenate([x, jnp.flip(x, axis=0)], axis=-1)     # (T, B, 2*In)
    if B_pad != B:
        x_pair = jnp.pad(x_pair, ((0, 0), (0, B_pad - B), (0, 0)))

    vmem = pl.BlockSpec(memory_space=pltpu.MemorySpace.VMEM)
    out_shapes = (
        jax.ShapeDtypeStruct((T, B_pad, H2), f32),   # lstm_out (fwd | bwd)
        jax.ShapeDtypeStruct((B_pad, H2), f32),      # h_n      (fwd | bwd)
        jax.ShapeDtypeStruct((B_pad, H2), f32),      # c_n      (fwd | bwd)
    )

    out, hn, cn = pl.pallas_call(
        _bilstm_kernel,
        out_shape=out_shapes,
        in_specs=[vmem] * 4,
        out_specs=tuple([vmem] * 3),
        scratch_shapes=[pltpu.VMEM((T, B_pad, 4 * H2), jnp.bfloat16)],
        compiler_params=pltpu.CompilerParams(vmem_limit_bytes=_VMEM_LIMIT_BYTES),
    )(x_pair, prepped["wih"], prepped["whh"], prepped["bias"])

    lstm_out = out[:, :B, :]
    h_cat = hn[:B][None]          # (1, B, 2H)
    c_cat = cn[:B][None]          # (1, B, 2H)
    return lstm_out, (h_cat, c_cat)


def make_params(key, input_size, hidden_size):
    """Deterministic nn.LSTM-style raw parameters (PyTorch shapes, U(-1/sqrt(H), 1/sqrt(H)))."""
    H, In = hidden_size, input_size
    k = 1.0 / jnp.sqrt(jnp.float32(H))
    keys = jax.random.split(key, 8)

    def u(kk, shape):
        return jax.random.uniform(kk, shape, jnp.float32, -k, k)

    return {
        "weight_ih_f": u(keys[0], (4 * H, In)),
        "weight_hh_f": u(keys[1], (4 * H, H)),
        "bias_ih_f": u(keys[2], (4 * H,)),
        "bias_hh_f": u(keys[3], (4 * H,)),
        "weight_ih_b": u(keys[4], (4 * H, In)),
        "weight_hh_b": u(keys[5], (4 * H, H)),
        "bias_ih_b": u(keys[6], (4 * H,)),
        "bias_hh_b": u(keys[7], (4 * H,)),
    }


def prepare_params(raw):
    """One-time parameter prep (hoisted out of the forward pass).

    Builds the fused, gate-major, pre-scaled, bf16-cast kernel operands:
      wih : (2*In, 8H)  rows [0:In] feed forward columns (x[t]),
                        rows [In:2In] feed backward columns (x[T-1-t])
      whh : (2H, 8H)    rows [0:H] = forward h, rows [H:2H] = backward h
      bias: (1, 8H)
    Column layout is gate-major [i_f i_b | f_f f_b | g_f g_b | o_f o_b]; i/f/o columns
    carry a folded 0.5 scale so one tanh over all 8H columns gives sigmoid and tanh(g).
    """
    H = raw["weight_hh_f"].shape[1]
    In = raw["weight_ih_f"].shape[1]
    f32, bf16 = jnp.float32, jnp.bfloat16
    gate_scale = (0.5, 0.5, 1.0, 0.5)   # i, f, g, o

    wih_dir = (raw["weight_ih_f"], raw["weight_ih_b"])
    whh_dir = (raw["weight_hh_f"], raw["weight_hh_b"])
    b_dir = (raw["bias_ih_f"] + raw["bias_hh_f"], raw["bias_ih_b"] + raw["bias_hh_b"])

    wih = jnp.zeros((2 * In, 8 * H), f32)
    whh = jnp.zeros((2 * H, 8 * H), f32)
    bias = jnp.zeros((1, 8 * H), f32)
    for gate in range(4):
        s = gate_scale[gate]
        for d in range(2):
            col = (2 * gate + d) * H
            wih = wih.at[d * In:(d + 1) * In, col:col + H].set(
                s * wih_dir[d][gate * H:(gate + 1) * H, :].T)
            whh = whh.at[d * H:(d + 1) * H, col:col + H].set(
                s * whh_dir[d][gate * H:(gate + 1) * H, :].T)
            bias = bias.at[0, col:col + H].set(s * b_dir[d][gate * H:(gate + 1) * H])
    return {"wih": wih.astype(bf16), "whh": whh.astype(bf16), "bias": bias}


def reference_forward(x, raw):
    """Pure-JAX reference (lax.scan), PyTorch gate order, bf16 matmuls / f32 accumulate."""
    T, B, _ = x.shape
    H = raw["weight_hh_f"].shape[1]
    bf16 = jnp.bfloat16

    def run(w_ih, w_hh, b_ih, b_hh, xs):
        wih = w_ih.T.astype(bf16)
        whh = w_hh.T.astype(bf16)
        b = (b_ih + b_hh)[None, :]

        def f(carry, x_t):
            h, c = carry
            gates = (jnp.dot(x_t.astype(bf16), wih, preferred_element_type=jnp.float32)
                     + jnp.dot(h.astype(bf16), whh, preferred_element_type=jnp.float32)
                     + b)
            i = jax.nn.sigmoid(gates[:, 0 * H:1 * H])
            fg = jax.nn.sigmoid(gates[:, 1 * H:2 * H])
            g = jnp.tanh(gates[:, 2 * H:3 * H])
            o = jax.nn.sigmoid(gates[:, 3 * H:4 * H])
            c = fg * c + i * g
            h = o * jnp.tanh(c)
            return (h, c), h

        z = jnp.zeros((B, H), jnp.float32)
        (h, c), ys = lax.scan(f, (z, z), xs)
        return ys, h, c

    out_f, hf, cf = run(raw["weight_ih_f"], raw["weight_hh_f"],
                        raw["bias_ih_f"], raw["bias_hh_f"], x)
    out_b_rev, hb, cb = run(raw["weight_ih_b"], raw["weight_hh_b"],
                            raw["bias_ih_b"], raw["bias_hh_b"], x[::-1])
    out_b = out_b_rev[::-1]
    lstm_out = jnp.concatenate([out_f, out_b], -1)
    h_cat = jnp.concatenate([hf, hb], -1)[None]
    c_cat = jnp.concatenate([cf, cb], -1)[None]
    return lstm_out, (h_cat, c_cat)


if __name__ == "__main__":
    seq_len, batch, input_size, hidden_size = 8, 2, 4, 32

    key = jax.random.PRNGKey(0)
    kx, kp = jax.random.split(key)
    x = jax.random.normal(kx, (seq_len, batch, input_size), jnp.float32)
    raw = make_params(kp, input_size, hidden_size)
    prepped = prepare_params(raw)      # one-time weight fusion / scaling / bf16 cast

    lstm_out, (h_cat, c_cat) = jax.block_until_ready(lstm_encoder_forward(x, prepped))

    # sanity-check against pure-JAX reference (bf16 matmuls + bf16 gx scratch -> loosened tol)
    ref_out, (ref_h, ref_c) = reference_forward(x, raw)
    assert lstm_out.shape == (seq_len, batch, 2 * hidden_size)
    assert h_cat.shape == (1, batch, 2 * hidden_size)
    assert c_cat.shape == (1, batch, 2 * hidden_size)
    assert jnp.allclose(lstm_out, ref_out, atol=2e-2, rtol=2e-2)
    assert jnp.allclose(h_cat, ref_h, atol=2e-2, rtol=2e-2)
    assert jnp.allclose(c_cat, ref_c, atol=2e-2, rtol=2e-2)

    print("KERNEL_OK")
</pallas_src>

<mosaic_0001>
module attributes {stable_mosaic.version = 11 : i64} {
  func.func @_bilstm_kernel(%arg0: memref<8x16x8xf32, #tpu.memory_space<vmem>>, %arg1: memref<8x256xbf16, #tpu.memory_space<vmem>>, %arg2: memref<64x256xbf16, #tpu.memory_space<vmem>>, %arg3: memref<1x256xf32, #tpu.memory_space<vmem>>, %arg4: memref<8x16x64xf32, #tpu.memory_space<vmem>>, %arg5: memref<16x64xf32, #tpu.memory_space<vmem>>, %arg6: memref<16x64xf32, #tpu.memory_space<vmem>>, %arg7: memref<8x16x256xbf16, #tpu.memory_space<vmem>>) attributes {dimension_semantics = [], scalar_prefetch = 0 : i64, scratch_operands = 1 : i64, tpu.core_type = #tpu.core_type<tc>} {
    %c0 = arith.constant 0 : index
    %c0_0 = arith.constant 0 : index
    %c0_1 = arith.constant 0 : index
    %0 = vector.load %arg0[%c0, %c0_0, %c0_1] : memref<8x16x8xf32, #tpu.memory_space<vmem>>, vector<8x16x8xf32>
    %1 = vector.shape_cast %0 : vector<8x16x8xf32> to vector<128x8xf32>
    %2 = arith.truncf %1 : vector<128x8xf32> to vector<128x8xbf16>
    %c0_2 = arith.constant 0 : index
    %c0_3 = arith.constant 0 : index
    %3 = vector.load %arg1[%c0_2, %c0_3] : memref<8x256xbf16, #tpu.memory_space<vmem>>, vector<8x256xbf16>
    %cst = arith.constant dense<0.000000e+00> : vector<128x256xf32>
    %4 = tpu.matmul %2, %3, %cst {dimension_numbers = #tpu.dot_dimension_numbers<[1], [0], [0], [1], [0, 0, 1, 1], [], []>} : vector<128x8xbf16>, vector<8x256xbf16>, vector<128x256xf32> -> vector<128x256xf32>
    %c0_4 = arith.constant 0 : index
    %c0_5 = arith.constant 0 : index
    %5 = vector.load %arg3[%c0_4, %c0_5] : memref<1x256xf32, #tpu.memory_space<vmem>>, vector<1x256xf32>
    %6 = vector.broadcast %5 : vector<1x256xf32> to vector<128x256xf32>
    %7 = arith.addf %4, %6 : vector<128x256xf32>
    %8 = vector.shape_cast %7 : vector<128x256xf32> to vector<8x16x256xf32>
    %9 = arith.truncf %8 : vector<8x16x256xf32> to vector<8x16x256xbf16>
    %c0_6 = arith.constant 0 : index
    %c0_7 = arith.constant 0 : index
    %c0_8 = arith.constant 0 : index
    %10 = vector.load %arg7[%c0_6, %c0_7, %c0_8] : memref<8x16x256xbf16, #tpu.memory_space<vmem>>, vector<8x16x256xbf16>
    tpu.vector_store %arg7[%c0_6, %c0_7, %c0_8], %9 {strides = array<i32>} : memref<8x16x256xbf16, #tpu.memory_space<vmem>>, vector<8x16x256xbf16>,
    %c0_9 = arith.constant 0 : index
    %c0_10 = arith.constant 0 : index
    %11 = vector.load %arg2[%c0_9, %c0_10] : memref<64x256xbf16, #tpu.memory_space<vmem>>, vector<64x256xbf16>
    %cst_11 = arith.constant 0.000000e+00 : f32
    %12 = vector.broadcast %cst_11 : f32 to vector<16x64xf32>
    %c0_i32 = arith.constant 0 : i32
    %13 = arith.index_cast %c0_i32 : i32 to index
    %c0_12 = arith.constant 0 : index
    %c0_13 = arith.constant 0 : index
    %14 = vector.load %arg7[%13, %c0_12, %c0_13] : memref<8x16x256xbf16, #tpu.memory_space<vmem>>, vector<1x16x256xbf16>
    %15 = vector.shape_cast %14 : vector<1x16x256xbf16> to vector<16x256xbf16>
    %16 = arith.truncf %12 : vector<16x64xf32> to vector<16x64xbf16>
    %cst_14 = arith.constant dense<0.000000e+00> : vector<16x256xf32>
    %17 = tpu.matmul %16, %11, %cst_14 {dimension_numbers = #tpu.dot_dimension_numbers<[1], [0], [0], [1], [0, 0, 1, 1], [], []>} : vector<16x64xbf16>, vector<64x256xbf16>, vector<16x256xf32> -> vector<16x256xf32>
    %18 = arith.extf %15 : vector<16x256xbf16> to vector<16x256xf32>
    %19 = arith.addf %18, %17 : vector<16x256xf32>
    %20 = math.tanh %19 : vector<16x256xf32>
    %cst_15 = arith.constant 5.000000e-01 : f32
    %21 = vector.broadcast %cst_15 : f32 to vector<16x256xf32>
    %22 = arith.mulf %21, %20 : vector<16x256xf32>
    %cst_16 = arith.constant 5.000000e-01 : f32
    %23 = vector.broadcast %cst_16 : f32 to vector<16x256xf32>
    %24 = arith.addf %22, %23 : vector<16x256xf32>
    %25 = vector.extract_strided_slice %24 {offsets = [0, 0], sizes = [16, 64], strides = [1, 1]} : vector<16x256xf32> to vector<16x64xf32>
    %26 = vector.extract_strided_slice %24 {offsets = [0, 64], sizes = [16, 64], strides = [1, 1]} : vector<16x256xf32> to vector<16x64xf32>
    %27 = vector.extract_strided_slice %20 {offsets = [0, 128], sizes = [16, 64], strides = [1, 1]} : vector<16x256xf32> to vector<16x64xf32>
    %28 = vector.extract_strided_slice %24 {offsets = [0, 192], sizes = [16, 64], strides = [1, 1]} : vector<16x256xf32> to vector<16x64xf32>
    %29 = arith.mulf %26, %12 : vector<16x64xf32>
    %30 = arith.mulf %25, %27 : vector<16x64xf32>
    %31 = arith.addf %29, %30 : vector<16x64xf32>
    %32 = math.tanh %31 : vector<16x64xf32>
    %33 = arith.mulf %28, %32 : vector<16x64xf32>
    %34 = vector.extract_strided_slice %33 {offsets = [0, 0], sizes = [16, 32], strides = [1, 1]} : vector<16x64xf32> to vector<16x32xf32>
    %35 = arith.index_cast %c0_i32 : i32 to index
    %c0_17 = arith.constant 0 : index
    %c0_18 = arith.constant 0 : index
    %36 = vector.load %arg4[%35, %c0_17, %c0_18] : memref<8x16x64xf32, #tpu.memory_space<vmem>>, vector<1x16x32xf32>
    %37 = vector.shape_cast %36 : vector<1x16x32xf32> to vector<16x32xf32>
    %38 = vector.shape_cast %34 : vector<16x32xf32> to vector<1x16x32xf32>
    tpu.vector_store %arg4[%35, %c0_17, %c0_18], %38 {strides = array<i32>} : memref<8x16x64xf32, #tpu.memory_space<vmem>>, vector<1x16x32xf32>,
    %39 = vector.extract_strided_slice %33 {offsets = [0, 32], sizes = [16, 32], strides = [1, 1]} : vector<16x64xf32> to vector<16x32xf32>
    %c7_i32 = arith.constant 7 : i32
    %40 = arith.subi %c7_i32, %c0_i32 : i32
    %41 = arith.index_cast %40 : i32 to index
    %c0_19 = arith.constant 0 : index
    %c32 = arith.constant 32 : index
    %42 = vector.load %arg4[%41, %c0_19, %c32] : memref<8x16x64xf32, #tpu.memory_space<vmem>>, vector<1x16x32xf32>
    %43 = vector.shape_cast %42 : vector<1x16x32xf32> to vector<16x32xf32>
    %44 = vector.shape_cast %39 : vector<16x32xf32> to vector<1x16x32xf32>
    tpu.vector_store %arg4[%41, %c0_19, %c32], %44 {strides = array<i32>} : memref<8x16x64xf32, #tpu.memory_space<vmem>>, vector<1x16x32xf32>,
    %c1_i32 = arith.constant 1 : i32
    %45 = arith.index_cast %c1_i32 : i32 to index
    %c0_20 = arith.constant 0 : index
    %c0_21 = arith.constant 0 : index
    %46 = vector.load %arg7[%45, %c0_20, %c0_21] : memref<8x16x256xbf16, #tpu.memory_space<vmem>>, vector<1x16x256xbf16>
    %47 = vector.shape_cast %46 : vector<1x16x256xbf16> to vector<16x256xbf16>
    %48 = arith.truncf %33 : vector<16x64xf32> to vector<16x64xbf16>
    %cst_22 = arith.constant dense<0.000000e+00> : vector<16x256xf32>
    %49 = tpu.matmul %48, %11, %cst_22 {dimension_numbers = #tpu.dot_dimension_numbers<[1], [0], [0], [1], [0, 0, 1, 1], [], []>} : vector<16x64xbf16>, vector<64x256xbf16>, vector<16x256xf32> -> vector<16x256xf32>
    %50 = arith.extf %47 : vector<16x256xbf16> to vector<16x256xf32>
    %51 = arith.addf %50, %49 : vector<16x256xf32>
    %52 = math.tanh %51 : vector<16x256xf32>
    %cst_23 = arith.constant 5.000000e-01 : f32
    %53 = vector.broadcast %cst_23 : f32 to vector<16x256xf32>
    %54 = arith.mulf %53, %52 : vector<16x256xf32>
    %cst_24 = arith.constant 5.000000e-01 : f32
    %55 = vector.broadcast %cst_24 : f32 to vector<16x256xf32>
    %56 = arith.addf %54, %55 : vector<16x256xf32>
    %57 = vector.extract_strided_slice %56 {offsets = [0, 0], sizes = [16, 64], strides = [1, 1]} : vector<16x256xf32> to vector<16x64xf32>
    %58 = vector.extract_strided_slice %56 {offsets = [0, 64], sizes = [16, 64], strides = [1, 1]} : vector<16x256xf32> to vector<16x64xf32>
    %59 = vector.extract_strided_slice %52 {offsets = [0, 128], sizes = [16, 64], strides = [1, 1]} : vector<16x256xf32> to vector<16x64xf32>
    %60 = vector.extract_strided_slice %56 {offsets = [0, 192], sizes = [16, 64], strides = [1, 1]} : vector<16x256xf32> to vector<16x64xf32>
    %61 = arith.mulf %58, %31 : vector<16x64xf32>
    %62 = arith.mulf %57, %59 : vector<16x64xf32>
    %63 = arith.addf %61, %62 : vector<16x64xf32>
    %64 = math.tanh %63 : vector<16x64xf32>
    %65 = arith.mulf %60, %64 : vector<16x64xf32>
    %66 = vector.extract_strided_slice %65 {offsets = [0, 0], sizes = [16, 32], strides = [1, 1]} : vector<16x64xf32> to vector<16x32xf32>
    %67 = arith.index_cast %c1_i32 : i32 to index
    %c0_25 = arith.constant 0 : index
    %c0_26 = arith.constant 0 : index
    %68 = vector.load %arg4[%67, %c0_25, %c0_26] : memref<8x16x64xf32, #tpu.memory_space<vmem>>, vector<1x16x32xf32>
    %69 = vector.shape_cast %68 : vector<1x16x32xf32> to vector<16x32xf32>
    %70 = vector.shape_cast %66 : vector<16x32xf32> to vector<1x16x32xf32>
    tpu.vector_store %arg4[%67, %c0_25, %c0_26], %70 {strides = array<i32>} : memref<8x16x64xf32, #tpu.memory_space<vmem>>, vector<1x16x32xf32>,
    %71 = vector.extract_strided_slice %65 {offsets = [0, 32], sizes = [16, 32], strides = [1, 1]} : vector<16x64xf32> to vector<16x32xf32>
    %c7_i32_27 = arith.constant 7 : i32
    %72 = arith.subi %c7_i32_27, %c1_i32 : i32
    %73 = arith.index_cast %72 : i32 to index
    %c0_28 = arith.constant 0 : index
    %c32_29 = arith.constant 32 : index
    %74 = vector.load %arg4[%73, %c0_28, %c32_29] : memref<8x16x64xf32, #tpu.memory_space<vmem>>, vector<1x16x32xf32>
    %75 = vector.shape_cast %74 : vector<1x16x32xf32> to vector<16x32xf32>
    %76 = vector.shape_cast %71 : vector<16x32xf32> to vector<1x16x32xf32>
    tpu.vector_store %arg4[%73, %c0_28, %c32_29], %76 {strides = array<i32>} : memref<8x16x64xf32, #tpu.memory_space<vmem>>, vector<1x16x32xf32>,
    %c2_i32 = arith.constant 2 : i32
    %77 = arith.index_cast %c2_i32 : i32 to index
    %c0_30 = arith.constant 0 : index
    %c0_31 = arith.constant 0 : index
    %78 = vector.load %arg7[%77, %c0_30, %c0_31] : memref<8x16x256xbf16, #tpu.memory_space<vmem>>, vector<1x16x256xbf16>
    %79 = vector.shape_cast %78 : vector<1x16x256xbf16> to vector<16x256xbf16>
    %80 = arith.truncf %65 : vector<16x64xf32> to vector<16x64xbf16>
    %cst_32 = arith.constant dense<0.000000e+00> : vector<16x256xf32>
    %81 = tpu.matmul %80, %11, %cst_32 {dimension_numbers = #tpu.dot_dimension_numbers<[1], [0], [0], [1], [0, 0, 1, 1], [], []>} : vector<16x64xbf16>, vector<64x256xbf16>, vector<16x256xf32> -> vector<16x256xf32>
    %82 = arith.extf %79 : vector<16x256xbf16> to vector<16x256xf32>
    %83 = arith.addf %82, %81 : vector<16x256xf32>
    %84 = math.tanh %83 : vector<16x256xf32>
    %cst_33 = arith.constant 5.000000e-01 : f32
    %85 = vector.broadcast %cst_33 : f32 to vector<16x256xf32>
    %86 = arith.mulf %85, %84 : vector<16x256xf32>
    %cst_34 = arith.constant 5.000000e-01 : f32
    %87 = vector.broadcast %cst_34 : f32 to vector<16x256xf32>
    %88 = arith.addf %86, %87 : vector<16x256xf32>
    %89 = vector.extract_strided_slice %88 {offsets = [0, 0], sizes = [16, 64], strides = [1, 1]} : vector<16x256xf32> to vector<16x64xf32>
    %90 = vector.extract_strided_slice %88 {offsets = [0, 64], sizes = [16, 64], strides = [1, 1]} : vector<16x256xf32> to vector<16x64xf32>
    %91 = vector.extract_strided_slice %84 {offsets = [0, 128], sizes = [16, 64], strides = [1, 1]} : vector<16x256xf32> to vector<16x64xf32>
    %92 = vector.extract_strided_slice %88 {offsets = [0, 192], sizes = [16, 64], strides = [1, 1]} : vector<16x256xf32> to vector<16x64xf32>
    %93 = arith.mulf %90, %63 : vector<16x64xf32>
    %94 = arith.mulf %89, %91 : vector<16x64xf32>
    %95 = arith.addf %93, %94 : vector<16x64xf32>
    %96 = math.tanh %95 : vector<16x64xf32>
    %97 = arith.mulf %92, %96 : vector<16x64xf32>
    %98 = vector.extract_strided_slice %97 {offsets = [0, 0], sizes = [16, 32], strides = [1, 1]} : vector<16x64xf32> to vector<16x32xf32>
    %99 = arith.index_cast %c2_i32 : i32 to index
    %c0_35 = arith.constant 0 : index
    %c0_36 = arith.constant 0 : index
    %100 = vector.load %arg4[%99, %c0_35, %c0_36] : memref<8x16x64xf32, #tpu.memory_space<vmem>>, vector<1x16x32xf32>
    %101 = vector.shape_cast %100 : vector<1x16x32xf32> to vector<16x32xf32>
    %102 = vector.shape_cast %98 : vector<16x32xf32> to vector<1x16x32xf32>
    tpu.vector_store %arg4[%99, %c0_35, %c0_36], %102 {strides = array<i32>} : memref<8x16x64xf32, #tpu.memory_space<vmem>>, vector<1x16x32xf32>,
    %103 = vector.extract_strided_slice %97 {offsets = [0, 32], sizes = [16, 32], strides = [1, 1]} : vector<16x64xf32> to vector<16x32xf32>
    %c7_i32_37 = arith.constant 7 : i32
    %104 = arith.subi %c7_i32_37, %c2_i32 : i32
    %105 = arith.index_cast %104 : i32 to index
    %c0_38 = arith.constant 0 : index
    %c32_39 = arith.constant 32 : index
    %106 = vector.load %arg4[%105, %c0_38, %c32_39] : memref<8x16x64xf32, #tpu.memory_space<vmem>>, vector<1x16x32xf32>
    %107 = vector.shape_cast %106 : vector<1x16x32xf32> to vector<16x32xf32>
    %108 = vector.shape_cast %103 : vector<16x32xf32> to vector<1x16x32xf32>
    tpu.vector_store %arg4[%105, %c0_38, %c32_39], %108 {strides = array<i32>} : memref<8x16x64xf32, #tpu.memory_space<vmem>>, vector<1x16x32xf32>,
    %c3_i32 = arith.constant 3 : i32
    %109 = arith.index_cast %c3_i32 : i32 to index
    %c0_40 = arith.constant 0 : index
    %c0_41 = arith.constant 0 : index
    %110 = vector.load %arg7[%109, %c0_40, %c0_41] : memref<8x16x256xbf16, #tpu.memory_space<vmem>>, vector<1x16x256xbf16>
    %111 = vector.shape_cast %110 : vector<1x16x256xbf16> to vector<16x256xbf16>
    %112 = arith.truncf %97 : vector<16x64xf32> to vector<16x64xbf16>
    %cst_42 = arith.constant dense<0.000000e+00> : vector<16x256xf32>
    %113 = tpu.matmul %112, %11, %cst_42 {dimension_numbers = #tpu.dot_dimension_numbers<[1], [0], [0], [1], [0, 0, 1, 1], [], []>} : vector<16x64xbf16>, vector<64x256xbf16>, vector<16x256xf32> -> vector<16x256xf32>
    %114 = arith.extf %111 : vector<16x256xbf16> to vector<16x256xf32>
    %115 = arith.addf %114, %113 : vector<16x256xf32>
    %116 = math.tanh %115 : vector<16x256xf32>
    %cst_43 = arith.constant 5.000000e-01 : f32
    %117 = vector.broadcast %cst_43 : f32 to vector<16x256xf32>
    %118 = arith.mulf %117, %116 : vector<16x256xf32>
    %cst_44 = arith.constant 5.000000e-01 : f32
    %119 = vector.broadcast %cst_44 : f32 to vector<16x256xf32>
    %120 = arith.addf %118, %119 : vector<16x256xf32>
    %121 = vector.extract_strided_slice %120 {offsets = [0, 0], sizes = [16, 64], strides = [1, 1]} : vector<16x256xf32> to vector<16x64xf32>
    %122 = vector.extract_strided_slice %120 {offsets = [0, 64], sizes = [16, 64], strides = [1, 1]} : vector<16x256xf32> to vector<16x64xf32>
    %123 = vector.extract_strided_slice %116 {offsets = [0, 128], sizes = [16, 64], strides = [1, 1]} : vector<16x256xf32> to vector<16x64xf32>
    %124 = vector.extract_strided_slice %120 {offsets = [0, 192], sizes = [16, 64], strides = [1, 1]} : vector<16x256xf32> to vector<16x64xf32>
    %125 = arith.mulf %122, %95 : vector<16x64xf32>
    %126 = arith.mulf %121, %123 : vector<16x64xf32>
    %127 = arith.addf %125, %126 : vector<16x64xf32>
    %128 = math.tanh %127 : vector<16x64xf32>
    %129 = arith.mulf %124, %128 : vector<16x64xf32>
    %130 = vector.extract_strided_slice %129 {offsets = [0, 0], sizes = [16, 32], strides = [1, 1]} : vector<16x64xf32> to vector<16x32xf32>
    %131 = arith.index_cast %c3_i32 : i32 to index
    %c0_45 = arith.constant 0 : index
    %c0_46 = arith.constant 0 : index
    %132 = vector.load %arg4[%131, %c0_45, %c0_46] : memref<8x16x64xf32, #tpu.memory_space<vmem>>, vector<1x16x32xf32>
    %133 = vector.shape_cast %132 : vector<1x16x32xf32> to vector<16x32xf32>
    %134 = vector.shape_cast %130 : vector<16x32xf32> to vector<1x16x32xf32>
    tpu.vector_store %arg4[%131, %c0_45, %c0_46], %134 {strides = array<i32>} : memref<8x16x64xf32, #tpu.memory_space<vmem>>, vector<1x16x32xf32>,
    %135 = vector.extract_strided_slice %129 {offsets = [0, 32], sizes = [16, 32], strides = [1, 1]} : vector<16x64xf32> to vector<16x32xf32>
    %c7_i32_47 = arith.constant 7 : i32
    %136 = arith.subi %c7_i32_47, %c3_i32 : i32
    %137 = arith.index_cast %136 : i32 to index
    %c0_48 = arith.constant 0 : index
    %c32_49 = arith.constant 32 : index
    %138 = vector.load %arg4[%137, %c0_48, %c32_49] : memref<8x16x64xf32, #tpu.memory_space<vmem>>, vector<1x16x32xf32>
    %139 = vector.shape_cast %138 : vector<1x16x32xf32> to vector<16x32xf32>
    %140 = vector.shape_cast %135 : vector<16x32xf32> to vector<1x16x32xf32>
    tpu.vector_store %arg4[%137, %c0_48, %c32_49], %140 {strides = array<i32>} : memref<8x16x64xf32, #tpu.memory_space<vmem>>, vector<1x16x32xf32>,
    %c4_i32 = arith.constant 4 : i32
    %141 = arith.index_cast %c4_i32 : i32 to index
    %c0_50 = arith.constant 0 : index
    %c0_51 = arith.constant 0 : index
    %142 = vector.load %arg7[%141, %c0_50, %c0_51] : memref<8x16x256xbf16, #tpu.memory_space<vmem>>, vector<1x16x256xbf16>
    %143 = vector.shape_cast %142 : vector<1x16x256xbf16> to vector<16x256xbf16>
    %144 = arith.truncf %129 : vector<16x64xf32> to vector<16x64xbf16>
    %cst_52 = arith.constant dense<0.000000e+00> : vector<16x256xf32>
    %145 = tpu.matmul %144, %11, %cst_52 {dimension_numbers = #tpu.dot_dimension_numbers<[1], [0], [0], [1], [0, 0, 1, 1], [], []>} : vector<16x64xbf16>, vector<64x256xbf16>, vector<16x256xf32> -> vector<16x256xf32>
    %146 = arith.extf %143 : vector<16x256xbf16> to vector<16x256xf32>
    %147 = arith.addf %146, %145 : vector<16x256xf32>
    %148 = math.tanh %147 : vector<16x256xf32>
    %cst_53 = arith.constant 5.000000e-01 : f32
    %149 = vector.broadcast %cst_53 : f32 to vector<16x256xf32>
    %150 = arith.mulf %149, %148 : vector<16x256xf32>
    %cst_54 = arith.constant 5.000000e-01 : f32
    %151 = vector.broadcast %cst_54 : f32 to vector<16x256xf32>
    %152 = arith.addf %150, %151 : vector<16x256xf32>
    %153 = vector.extract_strided_slice %152 {offsets = [0, 0], sizes = [16, 64], strides = [1, 1]} : vector<16x256xf32> to vector<16x64xf32>
    %154 = vector.extract_strided_slice %152 {offsets = [0, 64], sizes = [16, 64], strides = [1, 1]} : vector<16x256xf32> to vector<16x64xf32>
    %155 = vector.extract_strided_slice %148 {offsets = [0, 128], sizes = [16, 64], strides = [1, 1]} : vector<16x256xf32> to vector<16x64xf32>
    %156 = vector.extract_strided_slice %152 {offsets = [0, 192], sizes = [16, 64], strides = [1, 1]} : vector<16x256xf32> to vector<16x64xf32>
    %157 = arith.mulf %154, %127 : vector<16x64xf32>
    %158 = arith.mulf %153, %155 : vector<16x64xf32>
    %159 = arith.addf %157, %158 : vector<16x64xf32>
    %160 = math.tanh %159 : vector<16x64xf32>
    %161 = arith.mulf %156, %160 : vector<16x64xf32>
    %162 = vector.extract_strided_slice %161 {offsets = [0, 0], sizes = [16, 32], strides = [1, 1]} : vector<16x64xf32> to vector<16x32xf32>
    %163 = arith.index_cast %c4_i32 : i32 to index
    %c0_55 = arith.constant 0 : index
    %c0_56 = arith.constant 0 : index
    %164 = vector.load %arg4[%163, %c0_55, %c0_56] : memref<8x16x64xf32, #tpu.memory_space<vmem>>, vector<1x16x32xf32>
    %165 = vector.shape_cast %164 : vector<1x16x32xf32> to vector<16x32xf32>
    %166 = vector.shape_cast %162 : vector<16x32xf32> to vector<1x16x32xf32>
    tpu.vector_store %arg4[%163, %c0_55, %c0_56], %166 {strides = array<i32>} : memref<8x16x64xf32, #tpu.memory_space<vmem>>, vector<1x16x32xf32>,
    %167 = vector.extract_strided_slice %161 {offsets = [0, 32], sizes = [16, 32], strides = [1, 1]} : vector<16x64xf32> to vector<16x32xf32>
    %c7_i32_57 = arith.constant 7 : i32
    %168 = arith.subi %c7_i32_57, %c4_i32 : i32
    %169 = arith.index_cast %168 : i32 to index
    %c0_58 = arith.constant 0 : index
    %c32_59 = arith.constant 32 : index
    %170 = vector.load %arg4[%169, %c0_58, %c32_59] : memref<8x16x64xf32, #tpu.memory_space<vmem>>, vector<1x16x32xf32>
    %171 = vector.shape_cast %170 : vector<1x16x32xf32> to vector<16x32xf32>
    %172 = vector.shape_cast %167 : vector<16x32xf32> to vector<1x16x32xf32>
    tpu.vector_store %arg4[%169, %c0_58, %c32_59], %172 {strides = array<i32>} : memref<8x16x64xf32, #tpu.memory_space<vmem>>, vector<1x16x32xf32>,
    %c5_i32 = arith.constant 5 : i32
    %173 = arith.index_cast %c5_i32 : i32 to index
    %c0_60 = arith.constant 0 : index
    %c0_61 = arith.constant 0 : index
    %174 = vector.load %arg7[%173, %c0_60, %c0_61] : memref<8x16x256xbf16, #tpu.memory_space<vmem>>, vector<1x16x256xbf16>
    %175 = vector.shape_cast %174 : vector<1x16x256xbf16> to vector<16x256xbf16>
    %176 = arith.truncf %161 : vector<16x64xf32> to vector<16x64xbf16>
    %cst_62 = arith.constant dense<0.000000e+00> : vector<16x256xf32>
    %177 = tpu.matmul %176, %11, %cst_62 {dimension_numbers = #tpu.dot_dimension_numbers<[1], [0], [0], [1], [0, 0, 1, 1], [], []>} : vector<16x64xbf16>, vector<64x256xbf16>, vector<16x256xf32> -> vector<16x256xf32>
    %178 = arith.extf %175 : vector<16x256xbf16> to vector<16x256xf32>
    %179 = arith.addf %178, %177 : vector<16x256xf32>
    %180 = math.tanh %179 : vector<16x256xf32>
    %cst_63 = arith.constant 5.000000e-01 : f32
    %181 = vector.broadcast %cst_63 : f32 to vector<16x256xf32>
    %182 = arith.mulf %181, %180 : vector<16x256xf32>
    %cst_64 = arith.constant 5.000000e-01 : f32
    %183 = vector.broadcast %cst_64 : f32 to vector<16x256xf32>
    %184 = arith.addf %182, %183 : vector<16x256xf32>
    %185 = vector.extract_strided_slice %184 {offsets = [0, 0], sizes = [16, 64], strides = [1, 1]} : vector<16x256xf32> to vector<16x64xf32>
    %186 = vector.extract_strided_slice %184 {offsets = [0, 64], sizes = [16, 64], strides = [1, 1]} : vector<16x256xf32> to vector<16x64xf32>
    %187 = vector.extract_strided_slice %180 {offsets = [0, 128], sizes = [16, 64], strides = [1, 1]} : vector<16x256xf32> to vector<16x64xf32>
    %188 = vector.extract_strided_slice %184 {offsets = [0, 192], sizes = [16, 64], strides = [1, 1]} : vector<16x256xf32> to vector<16x64xf32>
    %189 = arith.mulf %186, %159 : vector<16x64xf32>
    %190 = arith.mulf %185, %187 : vector<16x64xf32>
    %191 = arith.addf %189, %190 : vector<16x64xf32>
    %192 = math.tanh %191 : vector<16x64xf32>
    %193 = arith.mulf %188, %192 : vector<16x64xf32>
    %194 = vector.extract_strided_slice %193 {offsets = [0, 0], sizes = [16, 32], strides = [1, 1]} : vector<16x64xf32> to vector<16x32xf32>
    %195 = arith.index_cast %c5_i32 : i32 to index
    %c0_65 = arith.constant 0 : index
    %c0_66 = arith.constant 0 : index
    %196 = vector.load %arg4[%195, %c0_65, %c0_66] : memref<8x16x64xf32, #tpu.memory_space<vmem>>, vector<1x16x32xf32>
    %197 = vector.shape_cast %196 : vector<1x16x32xf32> to vector<16x32xf32>
    %198 = vector.shape_cast %194 : vector<16x32xf32> to vector<1x16x32xf32>
    tpu.vector_store %arg4[%195, %c0_65, %c0_66], %198 {strides = array<i32>} : memref<8x16x64xf32, #tpu.memory_space<vmem>>, vector<1x16x32xf32>,
    %199 = vector.extract_strided_slice %193 {offsets = [0, 32], sizes = [16, 32], strides = [1, 1]} : vector<16x64xf32> to vector<16x32xf32>
    %c7_i32_67 = arith.constant 7 : i32
    %200 = arith.subi %c7_i32_67, %c5_i32 : i32
    %201 = arith.index_cast %200 : i32 to index
    %c0_68 = arith.constant 0 : index
    %c32_69 = arith.constant 32 : index
    %202 = vector.load %arg4[%201, %c0_68, %c32_69] : memref<8x16x64xf32, #tpu.memory_space<vmem>>, vector<1x16x32xf32>
    %203 = vector.shape_cast %202 : vector<1x16x32xf32> to vector<16x32xf32>
    %204 = vector.shape_cast %199 : vector<16x32xf32> to vector<1x16x32xf32>
    tpu.vector_store %arg4[%201, %c0_68, %c32_69], %204 {strides = array<i32>} : memref<8x16x64xf32, #tpu.memory_space<vmem>>, vector<1x16x32xf32>,
    %c6_i32 = arith.constant 6 : i32
    %205 = arith.index_cast %c6_i32 : i32 to index
    %c0_70 = arith.constant 0 : index
    %c0_71 = arith.constant 0 : index
    %206 = vector.load %arg7[%205, %c0_70, %c0_71] : memref<8x16x256xbf16, #tpu.memory_space<vmem>>, vector<1x16x256xbf16>
    %207 = vector.shape_cast %206 : vector<1x16x256xbf16> to vector<16x256xbf16>
    %208 = arith.truncf %193 : vector<16x64xf32> to vector<16x64xbf16>
    %cst_72 = arith.constant dense<0.000000e+00> : vector<16x256xf32>
    %209 = tpu.matmul %208, %11, %cst_72 {dimension_numbers = #tpu.dot_dimension_numbers<[1], [0], [0], [1], [0, 0, 1, 1], [], []>} : vector<16x64xbf16>, vector<64x256xbf16>, vector<16x256xf32> -> vector<16x256xf32>
    %210 = arith.extf %207 : vector<16x256xbf16> to vector<16x256xf32>
    %211 = arith.addf %210, %209 : vector<16x256xf32>
    %212 = math.tanh %211 : vector<16x256xf32>
    %cst_73 = arith.constant 5.000000e-01 : f32
    %213 = vector.broadcast %cst_73 : f32 to vector<16x256xf32>
    %214 = arith.mulf %213, %212 : vector<16x256xf32>
    %cst_74 = arith.constant 5.000000e-01 : f32
    %215 = vector.broadcast %cst_74 : f32 to vector<16x256xf32>
    %216 = arith.addf %214, %215 : vector<16x256xf32>
    %217 = vector.extract_strided_slice %216 {offsets = [0, 0], sizes = [16, 64], strides = [1, 1]} : vector<16x256xf32> to vector<16x64xf32>
    %218 = vector.extract_strided_slice %216 {offsets = [0, 64], sizes = [16, 64], strides = [1, 1]} : vector<16x256xf32> to vector<16x64xf32>
    %219 = vector.extract_strided_slice %212 {offsets = [0, 128], sizes = [16, 64], strides = [1, 1]} : vector<16x256xf32> to vector<16x64xf32>
    %220 = vector.extract_strided_slice %216 {offsets = [0, 192], sizes = [16, 64], strides = [1, 1]} : vector<16x256xf32> to vector<16x64xf32>
    %221 = arith.mulf %218, %191 : vector<16x64xf32>
    %222 = arith.mulf %217, %219 : vector<16x64xf32>
    %223 = arith.addf %221, %222 : vector<16x64xf32>
    %224 = math.tanh %223 : vector<16x64xf32>
    %225 = arith.mulf %220, %224 : vector<16x64xf32>
    %226 = vector.extract_strided_slice %225 {offsets = [0, 0], sizes = [16, 32], strides = [1, 1]} : vector<16x64xf32> to vector<16x32xf32>
    %227 = arith.index_cast %c6_i32 : i32 to index
    %c0_75 = arith.constant 0 : index
    %c0_76 = arith.constant 0 : index
    %228 = vector.load %arg4[%227, %c0_75, %c0_76] : memref<8x16x64xf32, #tpu.memory_space<vmem>>, vector<1x16x32xf32>
    %229 = vector.shape_cast %228 : vector<1x16x32xf32> to vector<16x32xf32>
    %230 = vector.shape_cast %226 : vector<16x32xf32> to vector<1x16x32xf32>
    tpu.vector_store %arg4[%227, %c0_75, %c0_76], %230 {strides = array<i32>} : memref<8x16x64xf32, #tpu.memory_space<vmem>>, vector<1x16x32xf32>,
    %231 = vector.extract_strided_slice %225 {offsets = [0, 32], sizes = [16, 32], strides = [1, 1]} : vector<16x64xf32> to vector<16x32xf32>
    %c7_i32_77 = arith.constant 7 : i32
    %232 = arith.subi %c7_i32_77, %c6_i32 : i32
    %233 = arith.index_cast %232 : i32 to index
    %c0_78 = arith.constant 0 : index
    %c32_79 = arith.constant 32 : index
    %234 = vector.load %arg4[%233, %c0_78, %c32_79] : memref<8x16x64xf32, #tpu.memory_space<vmem>>, vector<1x16x32xf32>
    %235 = vector.shape_cast %234 : vector<1x16x32xf32> to vector<16x32xf32>
    %236 = vector.shape_cast %231 : vector<16x32xf32> to vector<1x16x32xf32>
    tpu.vector_store %arg4[%233, %c0_78, %c32_79], %236 {strides = array<i32>} : memref<8x16x64xf32, #tpu.memory_space<vmem>>, vector<1x16x32xf32>,
    %c7_i32_80 = arith.constant 7 : i32
    %237 = arith.index_cast %c7_i32_80 : i32 to index
    %c0_81 = arith.constant 0 : index
    %c0_82 = arith.constant 0 : index
    %238 = vector.load %arg7[%237, %c0_81, %c0_82] : memref<8x16x256xbf16, #tpu.memory_space<vmem>>, vector<1x16x256xbf16>
    %239 = vector.shape_cast %238 : vector<1x16x256xbf16> to vector<16x256xbf16>
    %240 = arith.truncf %225 : vector<16x64xf32> to vector<16x64xbf16>
    %cst_83 = arith.constant dense<0.000000e+00> : vector<16x256xf32>
    %241 = tpu.matmul %240, %11, %cst_83 {dimension_numbers = #tpu.dot_dimension_numbers<[1], [0], [0], [1], [0, 0, 1, 1], [], []>} : vector<16x64xbf16>, vector<64x256xbf16>, vector<16x256xf32> -> vector<16x256xf32>
    %242 = arith.extf %239 : vector<16x256xbf16> to vector<16x256xf32>
    %243 = arith.addf %242, %241 : vector<16x256xf32>
    %244 = math.tanh %243 : vector<16x256xf32>
    %cst_84 = arith.constant 5.000000e-01 : f32
    %245 = vector.broadcast %cst_84 : f32 to vector<16x256xf32>
    %246 = arith.mulf %245, %244 : vector<16x256xf32>
    %cst_85 = arith.constant 5.000000e-01 : f32
    %247 = vector.broadcast %cst_85 : f32 to vector<16x256xf32>
    %248 = arith.addf %246, %247 : vector<16x256xf32>
    %249 = vector.extract_strided_slice %248 {offsets = [0, 0], sizes = [16, 64], strides = [1, 1]} : vector<16x256xf32> to vector<16x64xf32>
    %250 = vector.extract_strided_slice %248 {offsets = [0, 64], sizes = [16, 64], strides = [1, 1]} : vector<16x256xf32> to vector<16x64xf32>
    %251 = vector.extract_strided_slice %244 {offsets = [0, 128], sizes = [16, 64], strides = [1, 1]} : vector<16x256xf32> to vector<16x64xf32>
    %252 = vector.extract_strided_slice %248 {offsets = [0, 192], sizes = [16, 64], strides = [1, 1]} : vector<16x256xf32> to vector<16x64xf32>
    %253 = arith.mulf %250, %223 : vector<16x64xf32>
    %254 = arith.mulf %249, %251 : vector<16x64xf32>
    %255 = arith.addf %253, %254 : vector<16x64xf32>
    %256 = math.tanh %255 : vector<16x64xf32>
    %257 = arith.mulf %252, %256 : vector<16x64xf32>
    %258 = vector.extract_strided_slice %257 {offsets = [0, 0], sizes = [16, 32], strides = [1, 1]} : vector<16x64xf32> to vector<16x32xf32>
    %259 = arith.index_cast %c7_i32_80 : i32 to index
    %c0_86 = arith.constant 0 : index
    %c0_87 = arith.constant 0 : index
    %260 = vector.load %arg4[%259, %c0_86, %c0_87] : memref<8x16x64xf32, #tpu.memory_space<vmem>>, vector<1x16x32xf32>
    %261 = vector.shape_cast %260 : vector<1x16x32xf32> to vector<16x32xf32>
    %262 = vector.shape_cast %258 : vector<16x32xf32> to vector<1x16x32xf32>
    tpu.vector_store %arg4[%259, %c0_86, %c0_87], %262 {strides = array<i32>} : memref<8x16x64xf32, #tpu.memory_space<vmem>>, vector<1x16x32xf32>,
    %263 = vector.extract_strided_slice %257 {offsets = [0, 32], sizes = [16, 32], strides = [1, 1]} : vector<16x64xf32> to vector<16x32xf32>
    %c7_i32_88 = arith.constant 7 : i32
    %264 = arith.subi %c7_i32_88, %c7_i32_80 : i32
    %265 = arith.index_cast %264 : i32 to index
    %c0_89 = arith.constant 0 : index
    %c32_90 = arith.constant 32 : index
    %266 = vector.load %arg4[%265, %c0_89, %c32_90] : memref<8x16x64xf32, #tpu.memory_space<vmem>>, vector<1x16x32xf32>
    %267 = vector.shape_cast %266 : vector<1x16x32xf32> to vector<16x32xf32>
    %268 = vector.shape_cast %263 : vector<16x32xf32> to vector<1x16x32xf32>
    tpu.vector_store %arg4[%265, %c0_89, %c32_90], %268 {strides = array<i32>} : memref<8x16x64xf32, #tpu.memory_space<vmem>>, vector<1x16x32xf32>,
    %c8_i32 = arith.constant 8 : i32
    %c0_91 = arith.constant 0 : index
    %c0_92 = arith.constant 0 : index
    %269 = vector.load %arg5[%c0_91, %c0_92] : memref<16x64xf32, #tpu.memory_space<vmem>>, vector<16x64xf32>
    tpu.vector_store %arg5[%c0_91, %c0_92], %257 {strides = array<i32>} : memref<16x64xf32, #tpu.memory_space<vmem>>, vector<16x64xf32>,
    %c0_93 = arith.constant 0 : index
    %c0_94 = arith.constant 0 : index
    %270 = vector.load %arg6[%c0_93, %c0_94] : memref<16x64xf32, #tpu.memory_space<vmem>>, vector<16x64xf32>
    tpu.vector_store %arg6[%c0_93, %c0_94], %255 {strides = array<i32>} : memref<16x64xf32, #tpu.memory_space<vmem>>, vector<16x64xf32>,
    return
  }
}

</mosaic_0001>

<llo_original>
// kernel: lstm_encoder_forward.1
$region0: #{lstm_encoder_forward.1}
  #allocation0 [shape = 'u32[]', space=smem, size = 0x4, offset = 0x4, fixed_abs, tag = 'smem constant byte address 0x4 - core index']
  #allocation1 [shape = 'u32[144,128]{1,0:T(1,128)}', space=vmem, size = 0x12000, scoped, tag = 'internal scratch']
  #allocation2 [shape = 'bf16[8,16,256]{2,1,0:T(8,128)(2,1)}', space=vmem, size = 0x10000, scoped, tag = 'scratch operand']
  %s0 = inlined_call_operand.vmem [shape: f32[8,16,8], index: 0, kind: input, shape index: {}]
  %s1 = inlined_call_operand.vmem [shape: bf16[8,256], index: 1, kind: input, shape index: {}]
  %s2 = inlined_call_operand.vmem [shape: bf16[64,256], index: 2, kind: input, shape index: {}]
  %s3 = inlined_call_operand.vmem [shape: f32[1,256], index: 3, kind: input, shape index: {}]
  %s4 = inlined_call_operand.vmem [shape: f32[8,16,64], index: 4, kind: output, shape index: {0}]
  %s5 = inlined_call_operand.vmem [shape: f32[16,64], index: 5, kind: output, shape index: {1}]
  %s6 = inlined_call_operand.vmem [shape: f32[16,64], index: 6, kind: output, shape index: {2}]
  %7 = xla_tuple %s4, %s5, %s6
  %s8 = sld [smem:[#allocation0]]
  $region42: #{lstm_encoder_forward.1} parent=0
    _
  %s10 = ssub.s32 1, %s8
  %s11 = scalar_select 0, %s10, %s8
  // Predicated region
  $region2: #{lstm_encoder_forward.1} parent=0 // pred_check
    _
  $region3: #{lstm_encoder_forward.1} parent=0 // pred_check_branch
    %13 = sbr.rel (0) target = $region5
  $region4: #{lstm_encoder_forward.1} parent=0 // pred_region
    _
  $region5: #{lstm_encoder_forward.1} parent=0 // pred_fallthru
    _
  // Predicated region
  $region6: #{lstm_encoder_forward.1} parent=0 // pred_check
    _
  $region7: #{lstm_encoder_forward.1} parent=0 // pred_check_branch
    %15 = sbr.rel (0) target = $region9
  $region8: #{lstm_encoder_forward.1} parent=0 // pred_region
    _
  $region9: #{lstm_encoder_forward.1} parent=0 // pred_fallthru
    _
  // Predicated region
  $region10: #{lstm_encoder_forward.1} parent=0 // pred_check
    _
  $region11: #{lstm_encoder_forward.1} parent=0 // pred_check_branch
    %17 = sbr.rel (0) target = $region13
  $region12: #{lstm_encoder_forward.1} parent=0 // pred_region
    _
  $region13: #{lstm_encoder_forward.1} parent=0 // pred_fallthru
    _
  // Predicated region
  $region14: #{lstm_encoder_forward.1} parent=0 // pred_check
    _
  $region15: #{lstm_encoder_forward.1} parent=0 // pred_check_branch
    %19 = sbr.rel (0) target = $region17
  $region16: #{lstm_encoder_forward.1} parent=0 // pred_region
    _
  $region17: #{lstm_encoder_forward.1} parent=0 // pred_fallthru
    _
  %v21 = vld [vmem:[%s0] sm:$0xff]
  %v22 = vld [vmem:[%s0 + $0x8] sm:$0xff]
  %v23 = vld [vmem:[%s0 + $0x10] sm:$0xff]
  %v24 = vld [vmem:[%s0 + $0x18] sm:$0xff]
  %v25 = vld [vmem:[%s0 + $0x20] sm:$0xff]
  %v26 = vld [vmem:[%s0 + $0x28] sm:$0xff]
  %v27 = vld [vmem:[%s0 + $0x30] sm:$0xff]
  %v28 = vld [vmem:[%s0 + $0x38] sm:$0xff]
  %v29 = vld [vmem:[%s0 + $0x40] sm:$0xff]
  %v30 = vld [vmem:[%s0 + $0x48] sm:$0xff]
  %v31 = vld [vmem:[%s0 + $0x50] sm:$0xff]
  %v32 = vld [vmem:[%s0 + $0x58] sm:$0xff]
  %v33 = vld [vmem:[%s0 + $0x60] sm:$0xff]
  %v34 = vld [vmem:[%s0 + $0x68] sm:$0xff]
  %v35 = vld [vmem:[%s0 + $0x70] sm:$0xff]
  %v36 = vld [vmem:[%s0 + $0x78] sm:$0xff]
  %v37 = vpack.c.bf16 %v22, %v21
  %v38 = vpack.c.bf16 %v24, %v23
  %v39 = vpack.c.bf16 %v26, %v25
  %v40 = vpack.c.bf16 %v28, %v27
  %v41 = vpack.c.bf16 %v30, %v29
  %v42 = vpack.c.bf16 %v32, %v31
  %v43 = vpack.c.bf16 %v34, %v33
  %v44 = vpack.c.bf16 %v36, %v35
  %v45 = vld [vmem:[%s1] sm:$0xff]
  %v46 = vld [vmem:[%s3] sm:$0x3]
  %v48 = vlaneseq
  %v49 = vshrl.u32 %v48, 7
  %v50 = vsub.s32 0, %v49
  %v51 = vrot.slane %v46, %v50
  %v52 = vlaneseq
  %v53 = vshrl.u32 %v52, 7
  %v54 = vsub.s32 1, %v53
  %v55 = vrot.slane %v46, %v54
  %v59 = vunpack.c.l.b16 %v45
  %v60 = vunpack.c.h.b16 %v45
  %v61 = vpack.c.b16 %v59, %v59
  %v62 = vpack.c.b16 %v60, %v60
  %vm63 = vcmask 64512
  %v65 = vsel %vm63, %v37, 0
  %v68 = vsel %vm63, %v38, 0
  %v71 = vsel %vm63, %v39, 0
  %v74 = vsel %vm63, %v40, 0
  %v77 = vsel %vm63, %v41, 0
  %v80 = vsel %vm63, %v42, 0
  %v83 = vsel %vm63, %v43, 0
  %v86 = vsel %vm63, %v44, 0
  %vm88 = vcmask 1043456
  %v90 = vsel %vm88, %v61, 0
  %v93 = vsel %vm88, %v62, 0
  %95 = vmatprep.subr.bf16.mxu0 0
  %96 = vmatpush1.bf16.msra.mxu0 0
  %97 = vmatprep.subr.bf16.mxu0 0
  %98 = vmatpush1.bf16.msra.mxu0 0
  %99 = vmatprep.subr.bf16.mxu0 0
  %100 = vmatpush1.bf16.msra.mxu0 0
  %101 = vmatprep.subr.bf16.mxu0 0
  %102 = vmatpush1.bf16.msra.mxu0 0
  %103 = vmatprep.subr.bf16.mxu0 0
  %104 = vmatpush1.bf16.msra.mxu0 0
  %105 = vmatprep.subr.bf16.mxu0 0
  %106 = vmatpush1.bf16.msra.mxu0 0
  %107 = vmatprep.subr.bf16.mxu0 0
  %108 = vmatpush1.bf16.msra.mxu0 0
  %109 = vmatprep.subr.bf16.mxu0 %v93
  %110 = vmatpush1.bf16.msra.mxu0 %v90
  %111 = vmatprep.subr.bf16.mxu0 0
  %112 = vmatpush2.bf16.msra.mxu0 0
  %113 = vmatprep.subr.bf16.mxu0 0
  %114 = vmatpush2.bf16.msra.mxu0 0
  %115 = vmatprep.subr.bf16.mxu0 0
  %116 = vmatpush2.bf16.msra.mxu0 0
  %117 = vmatprep.subr.bf16.mxu0 0
  %118 = vmatpush2.bf16.msra.mxu0 0
  %119 = vmatprep.subr.bf16.mxu0 0
  %120 = vmatpush2.bf16.msra.mxu0 0
  %121 = vmatprep.subr.bf16.mxu0 0
  %122 = vmatpush2.bf16.msra.mxu0 0
  %123 = vmatprep.subr.bf16.mxu0 0
  %124 = vmatpush2.bf16.msra.mxu0 0
  %125 = vmatprep.subr.bf16.mxu0 0
  %126 = vmatpush2.bf16.msra.mxu0 0
  %127 = vmatprep.mubr.bf16.mxu0 0
  %128 = vmatmul.mubr.bf16.gmra.mxu0 %v65
  %v129 = vpop.f32.mrf.mxu0
  %v130 = vadd.f32 %v51, %v129
  %v131 = vpop.f32.mrf.mxu0
  %v132 = vadd.f32 %v55, %v131
  %v133 = vpop.f32.mrf.mxu0
  %v134 = vadd.f32 %v51, %v133
  %v135 = vpop.f32.mrf.mxu0
  %v136 = vadd.f32 %v55, %v135
  %137 = vmatprep.mubr.bf16.mxu0 0
  %138 = vmatmul.mubr.bf16.gmra.mxu0 %v68
  %v139 = vpop.f32.mrf.mxu0
  %v140 = vadd.f32 %v51, %v139
  %v141 = vpop.f32.mrf.mxu0
  %v142 = vadd.f32 %v55, %v141
  %v143 = vpop.f32.mrf.mxu0
  %v144 = vadd.f32 %v51, %v143
  %v145 = vpop.f32.mrf.mxu0
  %v146 = vadd.f32 %v55, %v145
  %147 = vmatprep.mubr.bf16.mxu0 0
  %148 = vmatmul.mubr.bf16.gmra.mxu0 %v71
  %v149 = vpop.f32.mrf.mxu0
  %v150 = vadd.f32 %v51, %v149
  %v151 = vpop.f32.mrf.mxu0
  %v152 = vadd.f32 %v55, %v151
  %v153 = vpop.f32.mrf.mxu0
  %v154 = vadd.f32 %v51, %v153
  %v155 = vpop.f32.mrf.mxu0
  %v156 = vadd.f32 %v55, %v155
  %157 = vmatprep.mubr.bf16.mxu0 0
  %158 = vmatmul.mubr.bf16.gmra.mxu0 %v74
  %v159 = vpop.f32.mrf.mxu0
  %v160 = vadd.f32 %v51, %v159
  %v161 = vpop.f32.mrf.mxu0
  %v162 = vadd.f32 %v55, %v161
  %v163 = vpop.f32.mrf.mxu0
  %v164 = vadd.f32 %v51, %v163
  %v165 = vpop.f32.mrf.mxu0
  %v166 = vadd.f32 %v55, %v165
  %167 = vmatprep.mubr.bf16.mxu0 0
  %168 = vmatmul.mubr.bf16.gmra.mxu0 %v77
  %v169 = vpop.f32.mrf.mxu0
  %v170 = vadd.f32 %v51, %v169
  %v171 = vpop.f32.mrf.mxu0
  %v172 = vadd.f32 %v55, %v171
  %v173 = vpop.f32.mrf.mxu0
  %v174 = vadd.f32 %v51, %v173
  %v175 = vpop.f32.mrf.mxu0
  %v176 = vadd.f32 %v55, %v175
  %177 = vmatprep.mubr.bf16.mxu0 0
  %178 = vmatmul.mubr.bf16.gmra.mxu0 %v80
  %v179 = vpop.f32.mrf.mxu0
  %v180 = vadd.f32 %v51, %v179
  %v181 = vpop.f32.mrf.mxu0
  %v182 = vadd.f32 %v55, %v181
  %v183 = vpop.f32.mrf.mxu0
  %v184 = vadd.f32 %v51, %v183
  %v185 = vpop.f32.mrf.mxu0
  %v186 = vadd.f32 %v55, %v185
  %187 = vmatprep.mubr.bf16.mxu0 0
  %188 = vmatmul.mubr.bf16.gmra.mxu0 %v83
  %v189 = vpop.f32.mrf.mxu0
  %v190 = vadd.f32 %v51, %v189
  %v191 = vpop.f32.mrf.mxu0
  %v192 = vadd.f32 %v55, %v191
  %v193 = vpop.f32.mrf.mxu0
  %v194 = vadd.f32 %v51, %v193
  %v195 = vpop.f32.mrf.mxu0
  %v196 = vadd.f32 %v55, %v195
  %197 = vmatprep.mubr.bf16.mxu0 0
  %198 = vmatmul.mubr.bf16.gmra.mxu0 %v86
  %v199 = vpop.f32.mrf.mxu0
  %v200 = vadd.f32 %v51, %v199
  %v201 = vpop.f32.mrf.mxu0
  %v202 = vadd.f32 %v55, %v201
  %v203 = vpop.f32.mrf.mxu0
  %v204 = vadd.f32 %v51, %v203
  %v205 = vpop.f32.mrf.mxu0
  %v206 = vadd.f32 %v55, %v205
  %207 = vdwg.mxu0
  %v208 = vpack.c.bf16 %v134, %v130
  %v209 = vpack.c.bf16 %v136, %v132
  %v210 = vpack.c.bf16 %v144, %v140
  %v211 = vpack.c.bf16 %v146, %v142
  %v212 = vpack.c.bf16 %v154, %v150
  %v213 = vpack.c.bf16 %v156, %v152
  %v214 = vpack.c.bf16 %v164, %v160
  %v215 = vpack.c.bf16 %v166, %v162
  %v216 = vpack.c.bf16 %v174, %v170
  %v217 = vpack.c.bf16 %v176, %v172
  %v218 = vpack.c.bf16 %v184, %v180
  %v219 = vpack.c.bf16 %v186, %v182
  %v220 = vpack.c.bf16 %v194, %v190
  %v221 = vpack.c.bf16 %v196, %v192
  %v222 = vpack.c.bf16 %v204, %v200
  %v223 = vpack.c.bf16 %v206, %v202
  %v240 = vunpack.c.l.b16 %v208
  %v241 = vunpack.c.l.b16 %v209
  %v242 = vunpack.c.h.b16 %v208
  %v243 = vunpack.c.h.b16 %v209
  %v244 = vunpack.c.l.b16 %v210
  %v245 = vunpack.c.l.b16 %v211
  %v246 = vunpack.c.h.b16 %v210
  %v247 = vunpack.c.h.b16 %v211
  %v248 = vunpack.c.l.b16 %v212
  %v249 = vunpack.c.l.b16 %v213
  %v250 = vunpack.c.h.b16 %v212
  %v251 = vunpack.c.h.b16 %v213
  %v252 = vunpack.c.l.b16 %v214
  %v253 = vunpack.c.l.b16 %v215
  %v254 = vunpack.c.h.b16 %v214
  %v255 = vunpack.c.h.b16 %v215
  %v256 = vunpack.c.l.b16 %v216
  %v257 = vunpack.c.l.b16 %v217
  %v258 = vunpack.c.h.b16 %v216
  %v259 = vunpack.c.h.b16 %v217
  %v260 = vunpack.c.l.b16 %v218
  %v261 = vunpack.c.l.b16 %v219
  %v262 = vunpack.c.h.b16 %v218
  %v263 = vunpack.c.h.b16 %v219
  %v264 = vunpack.c.l.b16 %v220
  %v265 = vunpack.c.l.b16 %v221
  %v266 = vunpack.c.h.b16 %v220
  %v267 = vunpack.c.h.b16 %v221
  %v268 = vunpack.c.l.b16 %v222
  %v269 = vunpack.c.l.b16 %v223
  %v270 = vunpack.c.h.b16 %v222
  %v271 = vunpack.c.h.b16 %v223
  %v272 = vpack.c.b16 %v241, %v240
  %v273 = vpack.c.b16 %v243, %v242
  %v274 = vpack.c.b16 %v245, %v244
  %v275 = vpack.c.b16 %v247, %v246
  %v276 = vpack.c.b16 %v249, %v248
  %v277 = vpack.c.b16 %v251, %v250
  %v278 = vpack.c.b16 %v253, %v252
  %v279 = vpack.c.b16 %v255, %v254
  %v280 = vpack.c.b16 %v257, %v256
  %v281 = vpack.c.b16 %v259, %v258
  %v282 = vpack.c.b16 %v261, %v260
  %v283 = vpack.c.b16 %v263, %v262
  %v284 = vpack.c.b16 %v265, %v264
  %v285 = vpack.c.b16 %v267, %v266
  %v286 = vpack.c.b16 %v269, %v268
  %v287 = vpack.c.b16 %v271, %v270
  %304 = vst [vmem:[#allocation2] sm:$0xff] %v272
  %305 = vst [vmem:[#allocation2 + $0x8] sm:$0xff] %v273
  %306 = vst [vmem:[#allocation2 + $0x10] sm:$0xff] %v274
  %307 = vst [vmem:[#allocation2 + $0x18] sm:$0xff] %v275
  %308 = vst [vmem:[#allocation2 + $0x20] sm:$0xff] %v276
  %309 = vst [vmem:[#allocation2 + $0x28] sm:$0xff] %v277
  %310 = vst [vmem:[#allocation2 + $0x30] sm:$0xff] %v278
  %311 = vst [vmem:[#allocation2 + $0x38] sm:$0xff] %v279
  %312 = vst [vmem:[#allocation2 + $0x40] sm:$0xff] %v280
  %313 = vst [vmem:[#allocation2 + $0x48] sm:$0xff] %v281
  %314 = vst [vmem:[#allocation2 + $0x50] sm:$0xff] %v282
  %315 = vst [vmem:[#allocation2 + $0x58] sm:$0xff] %v283
  %316 = vst [vmem:[#allocation2 + $0x60] sm:$0xff] %v284
  %317 = vst [vmem:[#allocation2 + $0x68] sm:$0xff] %v285
  %318 = vst [vmem:[#allocation2 + $0x70] sm:$0xff] %v286
  %319 = vst [vmem:[#allocation2 + $0x78] sm:$0xff] %v287
  %v320 = vld [vmem:[%s2] sm:$0xff]
  %v321 = vld [vmem:[%s2 + $0x8] sm:$0xff]
  %v322 = vld [vmem:[%s2 + $0x10] sm:$0xff]
  %v323 = vld [vmem:[%s2 + $0x18] sm:$0xff]
  %v324 = vld [vmem:[%s2 + $0x20] sm:$0xff]
  %v325 = vld [vmem:[%s2 + $0x28] sm:$0xff]
  %v326 = vld [vmem:[%s2 + $0x30] sm:$0xff]
  %v327 = vld [vmem:[%s2 + $0x38] sm:$0xff]
  %v328 = vld [vmem:[#allocation2] sm:$0xff]
  %v329 = vld [vmem:[#allocation2 + $0x8] sm:$0xff]
  %v338 = vunpack.c.l.b16 %v320
  %v339 = vunpack.c.h.b16 %v320
  %v340 = vunpack.c.l.b16 %v321
  %v341 = vunpack.c.h.b16 %v321
  %v342 = vunpack.c.l.b16 %v322
  %v343 = vunpack.c.h.b16 %v322
  %v344 = vunpack.c.l.b16 %v323
  %v345 = vunpack.c.h.b16 %v323
  %v346 = vunpack.c.l.b16 %v324
  %v347 = vunpack.c.h.b16 %v324
  %v348 = vunpack.c.l.b16 %v325
  %v349 = vunpack.c.h.b16 %v325
  %v350 = vunpack.c.l.b16 %v326
  %v351 = vunpack.c.h.b16 %v326
  %v352 = vunpack.c.l.b16 %v327
  %v353 = vunpack.c.h.b16 %v327
  %v354 = vpack.c.b16 %v340, %v338
  %v355 = vpack.c.b16 %v341, %v339
  %v356 = vpack.c.b16 %v344, %v342
  %v357 = vpack.c.b16 %v345, %v343
  %v358 = vpack.c.b16 %v348, %v346
  %v359 = vpack.c.b16 %v349, %v347
  %v360 = vpack.c.b16 %v352, %v350
  %v361 = vpack.c.b16 %v353, %v351
  %vm370 = vcmask 523264
  %v372 = vsel %vm370, 0, 0
  %374 = vmatprep.subr.bf16.mxu0 0
  %375 = vmatpush1.bf16.msra.mxu0 0
  %376 = vmatprep.subr.bf16.mxu0 0
  %377 = vmatpush1.bf16.msra.mxu0 0
  %378 = vmatprep.subr.bf16.mxu0 0
  %379 = vmatpush1.bf16.msra.mxu0 0
  %380 = vmatprep.subr.bf16.mxu0 0
  %381 = vmatpush1.bf16.msra.mxu0 0
  %382 = vmatprep.subr.bf16.mxu0 %v361
  %383 = vmatpush1.bf16.msra.mxu0 %v360
  %384 = vmatprep.subr.bf16.mxu0 %v359
  %385 = vmatpush1.bf16.msra.mxu0 %v358
  %386 = vmatprep.subr.bf16.mxu0 %v357
  %387 = vmatpush1.bf16.msra.mxu0 %v356
  %388 = vmatprep.subr.bf16.mxu0 %v355
  %389 = vmatpush1.bf16.msra.mxu0 %v354
  %390 = vmatprep.subr.bf16.mxu0 0
  %391 = vmatpush2.bf16.msra.mxu0 0
  %392 = vmatprep.subr.bf16.mxu0 0
  %393 = vmatpush2.bf16.msra.mxu0 0
  %394 = vmatprep.subr.bf16.mxu0 0
  %395 = vmatpush2.bf16.msra.mxu0 0
  %396 = vmatprep.subr.bf16.mxu0 0
  %397 = vmatpush2.bf16.msra.mxu0 0
  %398 = vmatprep.subr.bf16.mxu0 0
  %399 = vmatpush2.bf16.msra.mxu0 0
  %400 = vmatprep.subr.bf16.mxu0 0
  %401 = vmatpush2.bf16.msra.mxu0 0
  %402 = vmatprep.subr.bf16.mxu0 0
  %403 = vmatpush2.bf16.msra.mxu0 0
  %404 = vmatprep.subr.bf16.mxu0 0
  %405 = vmatpush2.bf16.msra.mxu0 0
  %406 = vmatprep.mubr.bf16.mxu0 0
  %407 = vmatmul.mubr.bf16.gmra.mxu0 %v372
  %v408 = vpop.f32.mrf.mxu0
  %v409 = vadd.f32 0.0, %v408
  %v410 = vpop.f32.mrf.mxu0
  %v411 = vadd.f32 0.0, %v410
  %v412 = vpop.f32.mrf.mxu0
  %v413 = vadd.f32 0.0, %v412
  %v414 = vpop.f32.mrf.mxu0
  %v415 = vadd.f32 0.0, %v414
  %416 = vdwg.mxu0
  %v417 = vunpack.c.l.bf16 %v328
  %v418 = vunpack.c.h.bf16 %v328
  %v419 = vunpack.c.l.bf16 %v329
  %v420 = vunpack.c.h.bf16 %v329
  %v421 = vadd.f32 %v417, %v409
  %v422 = vadd.f32 %v418, %v411
  %v423 = vadd.f32 %v419, %v413
  %v424 = vadd.f32 %v420, %v415
  %v425 = vtanh.pop %v421
  %v426 = vtanh.pop %v422
  %v427 = vtanh.pop %v423
  %v428 = vtanh.pop %v424
  %v429 = vmul.f32 %v425, 0.5
  %v430 = vmul.f32 %v426, 0.5
  %v431 = vmul.f32 %v427, 0.5
  %v432 = vmul.f32 %v428, 0.5
  %v433 = vadd.f32 %v429, 0.5
  %v434 = vadd.f32 %v430, 0.5
  %v435 = vadd.f32 %v431, 0.5
  %v436 = vadd.f32 %v432, 0.5
  %v437 = vmul.f32 %v433, 0.0
  %v438 = vmul.f32 %v435, 0.0
  %v439 = vmul.f32 %v433, %v426
  %v440 = vmul.f32 %v435, %v428
  %443 = vrot.lane.b32.xlu0 %v439, 64
  %v444 = vpop.permute.xlu0 %443
  %445 = vrot.lane.b32.xlu0 %v440, 64
  %v446 = vpop.permute.xlu0 %445
  %v449 = vadd.f32 %v437, %v444
  %v450 = vadd.f32 %v438, %v446
  %v451 = vtanh.pop %v449
  %v452 = vtanh.pop %v450
  %v453 = vmul.f32 %v434, %v451
  %v454 = vmul.f32 %v436, %v452
  %457 = vrot.lane.b32.xlu0 %v453, 64
  %v458 = vpop.permute.xlu0 %457
  %459 = vrot.lane.b32.xlu0 %v454, 64
  %v460 = vpop.permute.xlu0 %459
  %vm463 = vcmask 261120
  %464 = vst.msk [vmem:[%s4] sm:$0xff] %vm463, %v458
  %465 = vst.msk [vmem:[%s4 + $0x8] sm:$0xff] %vm463, %v460
  %s466 = scalar_lea.vmem %s4, 112
  %vm467 = vcmask 523520
  %468 = vst.msk [vmem:[%s466] sm:$0xff] %vm467, %v458
  %469 = vst.msk [vmem:[%s466 + $0x8] sm:$0xff] %vm467, %v460
  %s470 = scalar_lea.vmem [#allocation2], 16
  %v471 = vld [vmem:[%s470] sm:$0xff]
  %v472 = vld [vmem:[%s470 + $0x8] sm:$0xff]
  %v473 = vpack.c.bf16 %v454, %v453
  %475 = vrot.lane.b32.xlu0 %v473, 64
  %v476 = vpop.permute.xlu0 %475
  %v478 = vsel %vm370, %v476, 0
  %480 = vmatprep.subr.bf16.mxu0 0
  %481 = vmatpush1.bf16.msra.mxu0 0
  %482 = vmatprep.subr.bf16.mxu0 0
  %483 = vmatpush1.bf16.msra.mxu0 0
  %484 = vmatprep.subr.bf16.mxu0 0
  %485 = vmatpush1.bf16.msra.mxu0 0
  %486 = vmatprep.subr.bf16.mxu0 0
  %487 = vmatpush1.bf16.msra.mxu0 0
  %488 = vmatprep.subr.bf16.mxu0 %v361
  %489 = vmatpush1.bf16.msra.mxu0 %v360
  %490 = vmatprep.subr.bf16.mxu0 %v359
  %491 = vmatpush1.bf16.msra.mxu0 %v358
  %492 = vmatprep.subr.bf16.mxu0 %v357
  %493 = vmatpush1.bf16.msra.mxu0 %v356
  %494 = vmatprep.subr.bf16.mxu0 %v355
  %495 = vmatpush1.bf16.msra.mxu0 %v354
  %496 = vmatprep.subr.bf16.mxu0 0
  %497 = vmatpush2.bf16.msra.mxu0 0
  %498 = vmatprep.subr.bf16.mxu0 0
  %499 = vmatpush2.bf16.msra.mxu0 0
  %500 = vmatprep.subr.bf16.mxu0 0
  %501 = vmatpush2.bf16.msra.mxu0 0
  %502 = vmatprep.subr.bf16.mxu0 0
  %503 = vmatpush2.bf16.msra.mxu0 0
  %504 = vmatprep.subr.bf16.mxu0 0
  %505 = vmatpush2.bf16.msra.mxu0 0
  %506 = vmatprep.subr.bf16.mxu0 0
  %507 = vmatpush2.bf16.msra.mxu0 0
  %508 = vmatprep.subr.bf16.mxu0 0
  %509 = vmatpush2.bf16.msra.mxu0 0
  %510 = vmatprep.subr.bf16.mxu0 0
  %511 = vmatpush2.bf16.msra.mxu0 0
  %512 = vmatprep.mubr.bf16.mxu0 0
  %513 = vmatmul.mubr.bf16.gmra.mxu0 %v478
  %v514 = vpop.f32.mrf.mxu0
  %v515 = vadd.f32 0.0, %v514
  %v516 = vpop.f32.mrf.mxu0
  %v517 = vadd.f32 0.0, %v516
  %v518 = vpop.f32.mrf.mxu0
  %v519 = vadd.f32 0.0, %v518
  %v520 = vpop.f32.mrf.mxu0
  %v521 = vadd.f32 0.0, %v520
  %522 = vdwg.mxu0
  %v523 = vunpack.c.l.bf16 %v471
  %v524 = vunpack.c.h.bf16 %v471
  %v525 = vunpack.c.l.bf16 %v472
  %v526 = vunpack.c.h.bf16 %v472
  %v527 = vadd.f32 %v523, %v515
  %v528 = vadd.f32 %v524, %v517
  %v529 = vadd.f32 %v525, %v519
  %v530 = vadd.f32 %v526, %v521
  %v531 = vtanh.pop %v527
  %v532 = vtanh.pop %v528
  %v533 = vtanh.pop %v529
  %v534 = vtanh.pop %v530
  %v535 = vmul.f32 %v531, 0.5
  %v536 = vmul.f32 %v532, 0.5
  %v537 = vmul.f32 %v533, 0.5
  %v538 = vmul.f32 %v534, 0.5
  %v539 = vadd.f32 %v535, 0.5
  %v540 = vadd.f32 %v536, 0.5
  %v541 = vadd.f32 %v537, 0.5
  %v542 = vadd.f32 %v538, 0.5
  %v543 = vmul.f32 %v539, %v449
  %v544 = vmul.f32 %v541, %v450
  %v545 = vmul.f32 %v539, %v532
  %v546 = vmul.f32 %v541, %v534
  %549 = vrot.lane.b32.xlu0 %v545, 64
  %v550 = vpop.permute.xlu0 %549
  %551 = vrot.lane.b32.xlu0 %v546, 64
  %v552 = vpop.permute.xlu0 %551
  %v555 = vadd.f32 %v543, %v550
  %v556 = vadd.f32 %v544, %v552
  %v557 = vtanh.pop %v555
  %v558 = vtanh.pop %v556
  %v559 = vmul.f32 %v540, %v557
  %v560 = vmul.f32 %v542, %v558
  %563 = vrot.lane.b32.xlu0 %v559, 64
  %v564 = vpop.permute.xlu0 %563
  %565 = vrot.lane.b32.xlu0 %v560, 64
  %v566 = vpop.permute.xlu0 %565
  %s569 = scalar_lea.vmem %s4, 16
  %570 = vst.msk [vmem:[%s569] sm:$0xff] %vm463, %v564
  %571 = vst.msk [vmem:[%s569 + $0x8] sm:$0xff] %vm463, %v566
  %s572 = scalar_lea.vmem %s4, 96
  %573 = vst.msk [vmem:[%s572] sm:$0xff] %vm467, %v564
  %574 = vst.msk [vmem:[%s572 + $0x8] sm:$0xff] %vm467, %v566
  %s575 = scalar_lea.vmem [#allocation2], 32
  %v576 = vld [vmem:[%s575] sm:$0xff]
  %v577 = vld [vmem:[%s575 + $0x8] sm:$0xff]
  %v578 = vpack.c.bf16 %v560, %v559
  %580 = vrot.lane.b32.xlu0 %v578, 64
  %v581 = vpop.permute.xlu0 %580
  %v583 = vsel %vm370, %v581, 0
  %585 = vmatprep.subr.bf16.mxu0 0
  %586 = vmatpush1.bf16.msra.mxu0 0
  %587 = vmatprep.subr.bf16.mxu0 0
  %588 = vmatpush1.bf16.msra.mxu0 0
  %589 = vmatprep.subr.bf16.mxu0 0
  %590 = vmatpush1.bf16.msra.mxu0 0
  %591 = vmatprep.subr.bf16.mxu0 0
  %592 = vmatpush1.bf16.msra.mxu0 0
  %593 = vmatprep.subr.bf16.mxu0 %v361
  %594 = vmatpush1.bf16.msra.mxu0 %v360
  %595 = vmatprep.subr.bf16.mxu0 %v359
  %596 = vmatpush1.bf16.msra.mxu0 %v358
  %597 = vmatprep.subr.bf16.mxu0 %v357
  %598 = vmatpush1.bf16.msra.mxu0 %v356
  %599 = vmatprep.subr.bf16.mxu0 %v355
  %600 = vmatpush1.bf16.msra.mxu0 %v354
  %601 = vmatprep.subr.bf16.mxu0 0
  %602 = vmatpush2.bf16.msra.mxu0 0
  %603 = vmatprep.subr.bf16.mxu0 0
  %604 = vmatpush2.bf16.msra.mxu0 0
  %605 = vmatprep.subr.bf16.mxu0 0
  %606 = vmatpush2.bf16.msra.mxu0 0
  %607 = vmatprep.subr.bf16.mxu0 0
  %608 = vmatpush2.bf16.msra.mxu0 0
  %609 = vmatprep.subr.bf16.mxu0 0
  %610 = vmatpush2.bf16.msra.mxu0 0
  %611 = vmatprep.subr.bf16.mxu0 0
  %612 = vmatpush2.bf16.msra.mxu0 0
  %613 = vmatprep.subr.bf16.mxu0 0
  %614 = vmatpush2.bf16.msra.mxu0 0
  %615 = vmatprep.subr.bf16.mxu0 0
  %616 = vmatpush2.bf16.msra.mxu0 0
  %617 = vmatprep.mubr.bf16.mxu0 0
  %618 = vmatmul.mubr.bf16.gmra.mxu0 %v583
  %v619 = vpop.f32.mrf.mxu0
  %v620 = vadd.f32 0.0, %v619
  %v621 = vpop.f32.mrf.mxu0
  %v622 = vadd.f32 0.0, %v621
  %v623 = vpop.f32.mrf.mxu0
  %v624 = vadd.f32 0.0, %v623
  %v625 = vpop.f32.mrf.mxu0
  %v626 = vadd.f32 0.0, %v625
  %627 = vdwg.mxu0
  %v628 = vunpack.c.l.bf16 %v576
  %v629 = vunpack.c.h.bf16 %v576
  %v630 = vunpack.c.l.bf16 %v577
  %v631 = vunpack.c.h.bf16 %v577
  %v632 = vadd.f32 %v628, %v620
  %v633 = vadd.f32 %v629, %v622
  %v634 = vadd.f32 %v630, %v624
  %v635 = vadd.f32 %v631, %v626
  %v636 = vtanh.pop %v632
  %v637 = vtanh.pop %v633
  %v638 = vtanh.pop %v634
  %v639 = vtanh.pop %v635
  %v640 = vmul.f32 %v636, 0.5
  %v641 = vmul.f32 %v637, 0.5
  %v642 = vmul.f32 %v638, 0.5
  %v643 = vmul.f32 %v639, 0.5
  %v644 = vadd.f32 %v640, 0.5
  %v645 = vadd.f32 %v641, 0.5
  %v646 = vadd.f32 %v642, 0.5
  %v647 = vadd.f32 %v643, 0.5
  %v648 = vmul.f32 %v644, %v555
  %v649 = vmul.f32 %v646, %v556
  %v650 = vmul.f32 %v644, %v637
  %v651 = vmul.f32 %v646, %v639
  %654 = vrot.lane.b32.xlu0 %v650, 64
  %v655 = vpop.permute.xlu0 %654
  %656 = vrot.lane.b32.xlu0 %v651, 64
  %v657 = vpop.permute.xlu0 %656
  %v660 = vadd.f32 %v648, %v655
  %v661 = vadd.f32 %v649, %v657
  %v662 = vtanh.pop %v660
  %v663 = vtanh.pop %v661
  %v664 = vmul.f32 %v645, %v662
  %v665 = vmul.f32 %v647, %v663
  %668 = vrot.lane.b32.xlu0 %v664, 64
  %v669 = vpop.permute.xlu0 %668
  %670 = vrot.lane.b32.xlu0 %v665, 64
  %v671 = vpop.permute.xlu0 %670
  %s674 = scalar_lea.vmem %s4, 32
  %675 = vst.msk [vmem:[%s674] sm:$0xff] %vm463, %v669
  %676 = vst.msk [vmem:[%s674 + $0x8] sm:$0xff] %vm463, %v671
  %s677 = scalar_lea.vmem %s4, 80
  %678 = vst.msk [vmem:[%s677] sm:$0xff] %vm467, %v669
  %679 = vst.msk [vmem:[%s677 + $0x8] sm:$0xff] %vm467, %v671
  %s680 = scalar_lea.vmem [#allocation2], 48
  %v681 = vld [vmem:[%s680] sm:$0xff]
  %v682 = vld [vmem:[%s680 + $0x8] sm:$0xff]
  %v683 = vpack.c.bf16 %v665, %v664
  %685 = vrot.lane.b32.xlu0 %v683, 64
  %v686 = vpop.permute.xlu0 %685
  %v688 = vsel %vm370, %v686, 0
  %690 = vmatprep.subr.bf16.mxu0 0
  %691 = vmatpush1.bf16.msra.mxu0 0
  %692 = vmatprep.subr.bf16.mxu0 0
  %693 = vmatpush1.bf16.msra.mxu0 0
  %694 = vmatprep.subr.bf16.mxu0 0
  %695 = vmatpush1.bf16.msra.mxu0 0
  %696 = vmatprep.subr.bf16.mxu0 0
  %697 = vmatpush1.bf16.msra.mxu0 0
  %698 = vmatprep.subr.bf16.mxu0 %v361
  %699 = vmatpush1.bf16.msra.mxu0 %v360
  %700 = vmatprep.subr.bf16.mxu0 %v359
  %701 = vmatpush1.bf16.msra.mxu0 %v358
  %702 = vmatprep.subr.bf16.mxu0 %v357
  %703 = vmatpush1.bf16.msra.mxu0 %v356
  %704 = vmatprep.subr.bf16.mxu0 %v355
  %705 = vmatpush1.bf16.msra.mxu0 %v354
  %706 = vmatprep.subr.bf16.mxu0 0
  %707 = vmatpush2.bf16.msra.mxu0 0
  %708 = vmatprep.subr.bf16.mxu0 0
  %709 = vmatpush2.bf16.msra.mxu0 0
  %710 = vmatprep.subr.bf16.mxu0 0
  %711 = vmatpush2.bf16.msra.mxu0 0
  %712 = vmatprep.subr.bf16.mxu0 0
  %713 = vmatpush2.bf16.msra.mxu0 0
  %714 = vmatprep.subr.bf16.mxu0 0
  %715 = vmatpush2.bf16.msra.mxu0 0
  %716 = vmatprep.subr.bf16.mxu0 0
  %717 = vmatpush2.bf16.msra.mxu0 0
  %718 = vmatprep.subr.bf16.mxu0 0
  %719 = vmatpush2.bf16.msra.mxu0 0
  %720 = vmatprep.subr.bf16.mxu0 0
  %721 = vmatpush2.bf16.msra.mxu0 0
  %722 = vmatprep.mubr.bf16.mxu0 0
  %723 = vmatmul.mubr.bf16.gmra.mxu0 %v688
  %v724 = vpop.f32.mrf.mxu0
  %v725 = vadd.f32 0.0, %v724
  %v726 = vpop.f32.mrf.mxu0
  %v727 = vadd.f32 0.0, %v726
  %v728 = vpop.f32.mrf.mxu0
  %v729 = vadd.f32 0.0, %v728
  %v730 = vpop.f32.mrf.mxu0
  %v731 = vadd.f32 0.0, %v730
  %732 = vdwg.mxu0
  %v733 = vunpack.c.l.bf16 %v681
  %v734 = vunpack.c.h.bf16 %v681
  %v735 = vunpack.c.l.bf16 %v682
  %v736 = vunpack.c.h.bf16 %v682
  %v737 = vadd.f32 %v733, %v725
  %v738 = vadd.f32 %v734, %v727
  %v739 = vadd.f32 %v735, %v729
  %v740 = vadd.f32 %v736, %v731
  %v741 = vtanh.pop %v737
  %v742 = vtanh.pop %v738
  %v743 = vtanh.pop %v739
  %v744 = vtanh.pop %v740
  %v745 = vmul.f32 %v741, 0.5
  %v746 = vmul.f32 %v742, 0.5
  %v747 = vmul.f32 %v743, 0.5
  %v748 = vmul.f32 %v744, 0.5
  %v749 = vadd.f32 %v745, 0.5
  %v750 = vadd.f32 %v746, 0.5
  %v751 = vadd.f32 %v747, 0.5
  %v752 = vadd.f32 %v748, 0.5
  %v753 = vmul.f32 %v749, %v660
  %v754 = vmul.f32 %v751, %v661
  %v755 = vmul.f32 %v749, %v742
  %v756 = vmul.f32 %v751, %v744
  %759 = vrot.lane.b32.xlu0 %v755, 64
  %v760 = vpop.permute.xlu0 %759
  %761 = vrot.lane.b32.xlu0 %v756, 64
  %v762 = vpop.permute.xlu0 %761
  %v765 = vadd.f32 %v753, %v760
  %v766 = vadd.f32 %v754, %v762
  %v767 = vtanh.pop %v765
  %v768 = vtanh.pop %v766
  %v769 = vmul.f32 %v750, %v767
  %v770 = vmul.f32 %v752, %v768
  %773 = vrot.lane.b32.xlu0 %v769, 64
  %v774 = vpop.permute.xlu0 %773
  %775 = vrot.lane.b32.xlu0 %v770, 64
  %v776 = vpop.permute.xlu0 %775
  %s779 = scalar_lea.vmem %s4, 48
  %780 = vst.msk [vmem:[%s779] sm:$0xff] %vm463, %v774
  %781 = vst.msk [vmem:[%s779 + $0x8] sm:$0xff] %vm463, %v776
  %s782 = scalar_lea.vmem %s4, 64
  %783 = vst.msk [vmem:[%s782] sm:$0xff] %vm467, %v774
  %784 = vst.msk [vmem:[%s782 + $0x8] sm:$0xff] %vm467, %v776
  %s785 = scalar_lea.vmem [#allocation2], 64
  %v786 = vld [vmem:[%s785] sm:$0xff]
  %v787 = vld [vmem:[%s785 + $0x8] sm:$0xff]
  %v788 = vpack.c.bf16 %v770, %v769
  %790 = vrot.lane.b32.xlu0 %v788, 64
  %v791 = vpop.permute.xlu0 %790
  %v793 = vsel %vm370, %v791, 0
  %795 = vmatprep.subr.bf16.mxu0 0
  %796 = vmatpush1.bf16.msra.mxu0 0
  %797 = vmatprep.subr.bf16.mxu0 0
  %798 = vmatpush1.bf16.msra.mxu0 0
  %799 = vmatprep.subr.bf16.mxu0 0
  %800 = vmatpush1.bf16.msra.mxu0 0
  %801 = vmatprep.subr.bf16.mxu0 0
  %802 = vmatpush1.bf16.msra.mxu0 0
  %803 = vmatprep.subr.bf16.mxu0 %v361
  %804 = vmatpush1.bf16.msra.mxu0 %v360
  %805 = vmatprep.subr.bf16.mxu0 %v359
  %806 = vmatpush1.bf16.msra.mxu0 %v358
  %807 = vmatprep.subr.bf16.mxu0 %v357
  %808 = vmatpush1.bf16.msra.mxu0 %v356
  %809 = vmatprep.subr.bf16.mxu0 %v355
  %810 = vmatpush1.bf16.msra.mxu0 %v354
  %811 = vmatprep.subr.bf16.mxu0 0
  %812 = vmatpush2.bf16.msra.mxu0 0
  %813 = vmatprep.subr.bf16.mxu0 0
  %814 = vmatpush2.bf16.msra.mxu0 0
  %815 = vmatprep.subr.bf16.mxu0 0
  %816 = vmatpush2.bf16.msra.mxu0 0
  %817 = vmatprep.subr.bf16.mxu0 0
  %818 = vmatpush2.bf16.msra.mxu0 0
  %819 = vmatprep.subr.bf16.mxu0 0
  %820 = vmatpush2.bf16.msra.mxu0 0
  %821 = vmatprep.subr.bf16.mxu0 0
  %822 = vmatpush2.bf16.msra.mxu0 0
  %823 = vmatprep.subr.bf16.mxu0 0
  %824 = vmatpush2.bf16.msra.mxu0 0
  %825 = vmatprep.subr.bf16.mxu0 0
  %826 = vmatpush2.bf16.msra.mxu0 0
  %827 = vmatprep.mubr.bf16.mxu0 0
  %828 = vmatmul.mubr.bf16.gmra.mxu0 %v793
  %v829 = vpop.f32.mrf.mxu0
  %v830 = vadd.f32 0.0, %v829
  %v831 = vpop.f32.mrf.mxu0
  %v832 = vadd.f32 0.0, %v831
  %v833 = vpop.f32.mrf.mxu0
  %v834 = vadd.f32 0.0, %v833
  %v835 = vpop.f32.mrf.mxu0
  %v836 = vadd.f32 0.0, %v835
  %837 = vdwg.mxu0
  %v838 = vunpack.c.l.bf16 %v786
  %v839 = vunpack.c.h.bf16 %v786
  %v840 = vunpack.c.l.bf16 %v787
  %v841 = vunpack.c.h.bf16 %v787
  %v842 = vadd.f32 %v838, %v830
  %v843 = vadd.f32 %v839, %v832
  %v844 = vadd.f32 %v840, %v834
  %v845 = vadd.f32 %v841, %v836
  %v846 = vtanh.pop %v842
  %v847 = vtanh.pop %v843
  %v848 = vtanh.pop %v844
  %v849 = vtanh.pop %v845
  %v850 = vmul.f32 %v846, 0.5
  %v851 = vmul.f32 %v847, 0.5
  %v852 = vmul.f32 %v848, 0.5
  %v853 = vmul.f32 %v849, 0.5
  %v854 = vadd.f32 %v850, 0.5
  %v855 = vadd.f32 %v851, 0.5
  %v856 = vadd.f32 %v852, 0.5
  %v857 = vadd.f32 %v853, 0.5
  %v858 = vmul.f32 %v854, %v765
  %v859 = vmul.f32 %v856, %v766
  %v860 = vmul.f32 %v854, %v847
  %v861 = vmul.f32 %v856, %v849
  %864 = vrot.lane.b32.xlu0 %v860, 64
  %v865 = vpop.permute.xlu0 %864
  %866 = vrot.lane.b32.xlu0 %v861, 64
  %v867 = vpop.permute.xlu0 %866
  %v870 = vadd.f32 %v858, %v865
  %v871 = vadd.f32 %v859, %v867
  %v872 = vtanh.pop %v870
  %v873 = vtanh.pop %v871
  %v874 = vmul.f32 %v855, %v872
  %v875 = vmul.f32 %v857, %v873
  %878 = vrot.lane.b32.xlu0 %v874, 64
  %v879 = vpop.permute.xlu0 %878
  %880 = vrot.lane.b32.xlu0 %v875, 64
  %v881 = vpop.permute.xlu0 %880
  %884 = vst.msk [vmem:[%s782] sm:$0xff] %vm463, %v879
  %885 = vst.msk [vmem:[%s782 + $0x8] sm:$0xff] %vm463, %v881
  %886 = vst.msk [vmem:[%s779] sm:$0xff] %vm467, %v879
  %887 = vst.msk [vmem:[%s779 + $0x8] sm:$0xff] %vm467, %v881
  %s888 = scalar_lea.vmem [#allocation2], 80
  %v889 = vld [vmem:[%s888] sm:$0xff]
  %v890 = vld [vmem:[%s888 + $0x8] sm:$0xff]
  %v891 = vpack.c.bf16 %v875, %v874
  %893 = vrot.lane.b32.xlu0 %v891, 64
  %v894 = vpop.permute.xlu0 %893
  %v896 = vsel %vm370, %v894, 0
  %898 = vmatprep.subr.bf16.mxu0 0
  %899 = vmatpush1.bf16.msra.mxu0 0
  %900 = vmatprep.subr.bf16.mxu0 0
  %901 = vmatpush1.bf16.msra.mxu0 0
  %902 = vmatprep.subr.bf16.mxu0 0
  %903 = vmatpush1.bf16.msra.mxu0 0
  %904 = vmatprep.subr.bf16.mxu0 0
  %905 = vmatpush1.bf16.msra.mxu0 0
  %906 = vmatprep.subr.bf16.mxu0 %v361
  %907 = vmatpush1.bf16.msra.mxu0 %v360
  %908 = vmatprep.subr.bf16.mxu0 %v359
  %909 = vmatpush1.bf16.msra.mxu0 %v358
  %910 = vmatprep.subr.bf16.mxu0 %v357
  %911 = vmatpush1.bf16.msra.mxu0 %v356
  %912 = vmatprep.subr.bf16.mxu0 %v355
  %913 = vmatpush1.bf16.msra.mxu0 %v354
  %914 = vmatprep.subr.bf16.mxu0 0
  %915 = vmatpush2.bf16.msra.mxu0 0
  %916 = vmatprep.subr.bf16.mxu0 0
  %917 = vmatpush2.bf16.msra.mxu0 0
  %918 = vmatprep.subr.bf16.mxu0 0
  %919 = vmatpush2.bf16.msra.mxu0 0
  %920 = vmatprep.subr.bf16.mxu0 0
  %921 = vmatpush2.bf16.msra.mxu0 0
  %922 = vmatprep.subr.bf16.mxu0 0
  %923 = vmatpush2.bf16.msra.mxu0 0
  %924 = vmatprep.subr.bf16.mxu0 0
  %925 = vmatpush2.bf16.msra.mxu0 0
  %926 = vmatprep.subr.bf16.mxu0 0
  %927 = vmatpush2.bf16.msra.mxu0 0
  %928 = vmatprep.subr.bf16.mxu0 0
  %929 = vmatpush2.bf16.msra.mxu0 0
  %930 = vmatprep.mubr.bf16.mxu0 0
  %931 = vmatmul.mubr.bf16.gmra.mxu0 %v896
  %v932 = vpop.f32.mrf.mxu0
  %v933 = vadd.f32 0.0, %v932
  %v934 = vpop.f32.mrf.mxu0
  %v935 = vadd.f32 0.0, %v934
  %v936 = vpop.f32.mrf.mxu0
  %v937 = vadd.f32 0.0, %v936
  %v938 = vpop.f32.mrf.mxu0
  %v939 = vadd.f32 0.0, %v938
  %940 = vdwg.mxu0
  %v941 = vunpack.c.l.bf16 %v889
  %v942 = vunpack.c.h.bf16 %v889
  %v943 = vunpack.c.l.bf16 %v890
  %v944 = vunpack.c.h.bf16 %v890
  %v945 = vadd.f32 %v941, %v933
  %v946 = vadd.f32 %v942, %v935
  %v947 = vadd.f32 %v943, %v937
  %v948 = vadd.f32 %v944, %v939
  %v949 = vtanh.pop %v945
  %v950 = vtanh.pop %v946
  %v951 = vtanh.pop %v947
  %v952 = vtanh.pop %v948
  %v953 = vmul.f32 %v949, 0.5
  %v954 = vmul.f32 %v950, 0.5
  %v955 = vmul.f32 %v951, 0.5
  %v956 = vmul.f32 %v952, 0.5
  %v957 = vadd.f32 %v953, 0.5
  %v958 = vadd.f32 %v954, 0.5
  %v959 = vadd.f32 %v955, 0.5
  %v960 = vadd.f32 %v956, 0.5
  %v961 = vmul.f32 %v957, %v870
  %v962 = vmul.f32 %v959, %v871
  %v963 = vmul.f32 %v957, %v950
  %v964 = vmul.f32 %v959, %v952
  %967 = vrot.lane.b32.xlu0 %v963, 64
  %v968 = vpop.permute.xlu0 %967
  %969 = vrot.lane.b32.xlu0 %v964, 64
  %v970 = vpop.permute.xlu0 %969
  %v973 = vadd.f32 %v961, %v968
  %v974 = vadd.f32 %v962, %v970
  %v975 = vtanh.pop %v973
  %v976 = vtanh.pop %v974
  %v977 = vmul.f32 %v958, %v975
  %v978 = vmul.f32 %v960, %v976
  %981 = vrot.lane.b32.xlu0 %v977, 64
  %v982 = vpop.permute.xlu0 %981
  %983 = vrot.lane.b32.xlu0 %v978, 64
  %v984 = vpop.permute.xlu0 %983
  %987 = vst.msk [vmem:[%s677] sm:$0xff] %vm463, %v982
  %988 = vst.msk [vmem:[%s677 + $0x8] sm:$0xff] %vm463, %v984
  %989 = vst.msk [vmem:[%s674] sm:$0xff] %vm467, %v982
  %990 = vst.msk [vmem:[%s674 + $0x8] sm:$0xff] %vm467, %v984
  %s991 = scalar_lea.vmem [#allocation2], 96
  %v992 = vld [vmem:[%s991] sm:$0xff]
  %v993 = vld [vmem:[%s991 + $0x8] sm:$0xff]
  %v994 = vpack.c.bf16 %v978, %v977
  %996 = vrot.lane.b32.xlu0 %v994, 64
  %v997 = vpop.permute.xlu0 %996
  %v999 = vsel %vm370, %v997, 0
  %1001 = vmatprep.subr.bf16.mxu0 0
  %1002 = vmatpush1.bf16.msra.mxu0 0
  %1003 = vmatprep.subr.bf16.mxu0 0
  %1004 = vmatpush1.bf16.msra.mxu0 0
  %1005 = vmatprep.subr.bf16.mxu0 0
  %1006 = vmatpush1.bf16.msra.mxu0 0
  %1007 = vmatprep.subr.bf16.mxu0 0
  %1008 = vmatpush1.bf16.msra.mxu0 0
  %1009 = vmatprep.subr.bf16.mxu0 %v361
  %1010 = vmatpush1.bf16.msra.mxu0 %v360
  %1011 = vmatprep.subr.bf16.mxu0 %v359
  %1012 = vmatpush1.bf16.msra.mxu0 %v358
  %1013 = vmatprep.subr.bf16.mxu0 %v357
  %1014 = vmatpush1.bf16.msra.mxu0 %v356
  %1015 = vmatprep.subr.bf16.mxu0 %v355
  %1016 = vmatpush1.bf16.msra.mxu0 %v354
  %1017 = vmatprep.subr.bf16.mxu0 0
  %1018 = vmatpush2.bf16.msra.mxu0 0
  %1019 = vmatprep.subr.bf16.mxu0 0
  %1020 = vmatpush2.bf16.msra.mxu0 0
  %1021 = vmatprep.subr.bf16.mxu0 0
  %1022 = vmatpush2.bf16.msra.mxu0 0
  %1023 = vmatprep.subr.bf16.mxu0 0
  %1024 = vmatpush2.bf16.msra.mxu0 0
  %1025 = vmatprep.subr.bf16.mxu0 0
  %1026 = vmatpush2.bf16.msra.mxu0 0
  %1027 = vmatprep.subr.bf16.mxu0 0
  %1028 = vmatpush2.bf16.msra.mxu0 0
  %1029 = vmatprep.subr.bf16.mxu0 0
  %1030 = vmatpush2.bf16.msra.mxu0 0
  %1031 = vmatprep.subr.bf16.mxu0 0
  %1032 = vmatpush2.bf16.msra.mxu0 0
  %1033 = vmatprep.mubr.bf16.mxu0 0
  %1034 = vmatmul.mubr.bf16.gmra.mxu0 %v999
  %v1035 = vpop.f32.mrf.mxu0
  %v1036 = vadd.f32 0.0, %v1035
  %v1037 = vpop.f32.mrf.mxu0
  %v1038 = vadd.f32 0.0, %v1037
  %v1039 = vpop.f32.mrf.mxu0
  %v1040 = vadd.f32 0.0, %v1039
  %v1041 = vpop.f32.mrf.mxu0
  %v1042 = vadd.f32 0.0, %v1041
  %1043 = vdwg.mxu0
  %v1044 = vunpack.c.l.bf16 %v992
  %v1045 = vunpack.c.h.bf16 %v992
  %v1046 = vunpack.c.l.bf16 %v993
  %v1047 = vunpack.c.h.bf16 %v993
  %v1048 = vadd.f32 %v1044, %v1036
  %v1049 = vadd.f32 %v1045, %v1038
  %v1050 = vadd.f32 %v1046, %v1040
  %v1051 = vadd.f32 %v1047, %v1042
  %v1052 = vtanh.pop %v1048
  %v1053 = vtanh.pop %v1049
  %v1054 = vtanh.pop %v1050
  %v1055 = vtanh.pop %v1051
  %v1056 = vmul.f32 %v1052, 0.5
  %v1057 = vmul.f32 %v1053, 0.5
  %v1058 = vmul.f32 %v1054, 0.5
  %v1059 = vmul.f32 %v1055, 0.5
  %v1060 = vadd.f32 %v1056, 0.5
  %v1061 = vadd.f32 %v1057, 0.5
  %v1062 = vadd.f32 %v1058, 0.5
  %v1063 = vadd.f32 %v1059, 0.5
  %v1064 = vmul.f32 %v1060, %v973
  %v1065 = vmul.f32 %v1062, %v974
  %v1066 = vmul.f32 %v1060, %v1053
  %v1067 = vmul.f32 %v1062, %v1055
  %1070 = vrot.lane.b32.xlu0 %v1066, 64
  %v1071 = vpop.permute.xlu0 %1070
  %1072 = vrot.lane.b32.xlu0 %v1067, 64
  %v1073 = vpop.permute.xlu0 %1072
  %v1076 = vadd.f32 %v1064, %v1071
  %v1077 = vadd.f32 %v1065, %v1073
  %v1078 = vtanh.pop %v1076
  %v1079 = vtanh.pop %v1077
  %v1080 = vmul.f32 %v1061, %v1078
  %v1081 = vmul.f32 %v1063, %v1079
  %1084 = vrot.lane.b32.xlu0 %v1080, 64
  %v1085 = vpop.permute.xlu0 %1084
  %1086 = vrot.lane.b32.xlu0 %v1081, 64
  %v1087 = vpop.permute.xlu0 %1086
  %1090 = vst.msk [vmem:[%s572] sm:$0xff] %vm463, %v1085
  %1091 = vst.msk [vmem:[%s572 + $0x8] sm:$0xff] %vm463, %v1087
  %1092 = vst.msk [vmem:[%s569] sm:$0xff] %vm467, %v1085
  %1093 = vst.msk [vmem:[%s569 + $0x8] sm:$0xff] %vm467, %v1087
  %s1094 = scalar_lea.vmem [#allocation2], 112
  %v1095 = vld [vmem:[%s1094] sm:$0xff]
  %v1096 = vld [vmem:[%s1094 + $0x8] sm:$0xff]
  %v1097 = vpack.c.bf16 %v1081, %v1080
  %1099 = vrot.lane.b32.xlu0 %v1097, 64
  %v1100 = vpop.permute.xlu0 %1099
  %v1102 = vsel %vm370, %v1100, 0
  %1104 = vmatprep.subr.bf16.mxu0 0
  %1105 = vmatpush1.bf16.msra.mxu0 0
  %1106 = vmatprep.subr.bf16.mxu0 0
  %1107 = vmatpush1.bf16.msra.mxu0 0
  %1108 = vmatprep.subr.bf16.mxu0 0
  %1109 = vmatpush1.bf16.msra.mxu0 0
  %1110 = vmatprep.subr.bf16.mxu0 0
  %1111 = vmatpush1.bf16.msra.mxu0 0
  %1112 = vmatprep.subr.bf16.mxu0 %v361
  %1113 = vmatpush1.bf16.msra.mxu0 %v360
  %1114 = vmatprep.subr.bf16.mxu0 %v359
  %1115 = vmatpush1.bf16.msra.mxu0 %v358
  %1116 = vmatprep.subr.bf16.mxu0 %v357
  %1117 = vmatpush1.bf16.msra.mxu0 %v356
  %1118 = vmatprep.subr.bf16.mxu0 %v355
  %1119 = vmatpush1.bf16.msra.mxu0 %v354
  %1120 = vmatprep.subr.bf16.mxu0 0
  %1121 = vmatpush2.bf16.msra.mxu0 0
  %1122 = vmatprep.subr.bf16.mxu0 0
  %1123 = vmatpush2.bf16.msra.mxu0 0
  %1124 = vmatprep.subr.bf16.mxu0 0
  %1125 = vmatpush2.bf16.msra.mxu0 0
  %1126 = vmatprep.subr.bf16.mxu0 0
  %1127 = vmatpush2.bf16.msra.mxu0 0
  %1128 = vmatprep.subr.bf16.mxu0 0
  %1129 = vmatpush2.bf16.msra.mxu0 0
  %1130 = vmatprep.subr.bf16.mxu0 0
  %1131 = vmatpush2.bf16.msra.mxu0 0
  %1132 = vmatprep.subr.bf16.mxu0 0
  %1133 = vmatpush2.bf16.msra.mxu0 0
  %1134 = vmatprep.subr.bf16.mxu0 0
  %1135 = vmatpush2.bf16.msra.mxu0 0
  %1136 = vmatprep.mubr.bf16.mxu0 0
  %1137 = vmatmul.mubr.bf16.gmra.mxu0 %v1102
  %v1138 = vpop.f32.mrf.mxu0
  %v1139 = vadd.f32 0.0, %v1138
  %v1140 = vpop.f32.mrf.mxu0
  %v1141 = vadd.f32 0.0, %v1140
  %v1142 = vpop.f32.mrf.mxu0
  %v1143 = vadd.f32 0.0, %v1142
  %v1144 = vpop.f32.mrf.mxu0
  %v1145 = vadd.f32 0.0, %v1144
  %1146 = vdwg.mxu0
  %v1147 = vunpack.c.l.bf16 %v1095
  %v1148 = vunpack.c.h.bf16 %v1095
  %v1149 = vunpack.c.l.bf16 %v1096
  %v1150 = vunpack.c.h.bf16 %v1096
  %v1151 = vadd.f32 %v1147, %v1139
  %v1152 = vadd.f32 %v1148, %v1141
  %v1153 = vadd.f32 %v1149, %v1143
  %v1154 = vadd.f32 %v1150, %v1145
  %v1155 = vtanh.pop %v1151
  %v1156 = vtanh.pop %v1152
  %v1157 = vtanh.pop %v1153
  %v1158 = vtanh.pop %v1154
  %v1159 = vmul.f32 %v1155, 0.5
  %v1160 = vmul.f32 %v1156, 0.5
  %v1161 = vmul.f32 %v1157, 0.5
  %v1162 = vmul.f32 %v1158, 0.5
  %v1163 = vadd.f32 %v1159, 0.5
  %v1164 = vadd.f32 %v1160, 0.5
  %v1165 = vadd.f32 %v1161, 0.5
  %v1166 = vadd.f32 %v1162, 0.5
  %v1167 = vmul.f32 %v1163, %v1076
  %v1168 = vmul.f32 %v1165, %v1077
  %v1169 = vmul.f32 %v1163, %v1156
  %v1170 = vmul.f32 %v1165, %v1158
  %1173 = vrot.lane.b32.xlu0 %v1169, 64
  %v1174 = vpop.permute.xlu0 %1173
  %1175 = vrot.lane.b32.xlu0 %v1170, 64
  %v1176 = vpop.permute.xlu0 %1175
  %v1179 = vadd.f32 %v1167, %v1174
  %v1180 = vadd.f32 %v1168, %v1176
  %v1181 = vtanh.pop %v1179
  %v1182 = vtanh.pop %v1180
  %v1183 = vmul.f32 %v1164, %v1181
  %v1184 = vmul.f32 %v1166, %v1182
  %1187 = vrot.lane.b32.xlu0 %v1183, 64
  %v1188 = vpop.permute.xlu0 %1187
  %1189 = vrot.lane.b32.xlu0 %v1184, 64
  %v1190 = vpop.permute.xlu0 %1189
  %1193 = vst.msk [vmem:[%s466] sm:$0xff] %vm463, %v1188
  %1194 = vst.msk [vmem:[%s466 + $0x8] sm:$0xff] %vm463, %v1190
  %1195 = vst.msk [vmem:[%s4] sm:$0xff] %vm467, %v1188
  %1196 = vst.msk [vmem:[%s4 + $0x8] sm:$0xff] %vm467, %v1190
  %1197 = vst.msk [vmem:[%s5] sm:$0xff] %vm370, %v1188
  %1198 = vst.msk [vmem:[%s5 + $0x8] sm:$0xff] %vm370, %v1190
  %1201 = vrot.lane.b32.xlu0 %v1179, 64
  %v1202 = vpop.permute.xlu0 %1201
  %1203 = vrot.lane.b32.xlu0 %v1180, 64
  %v1204 = vpop.permute.xlu0 %1203
  %1207 = vst.msk [vmem:[%s6] sm:$0xff] %vm370, %v1202
  %1208 = vst.msk [vmem:[%s6 + $0x8] sm:$0xff] %vm370, %v1204
  // Predicated region
  $region18: #{lstm_encoder_forward.1} parent=0 // pred_check
    _
  $region19: #{lstm_encoder_forward.1} parent=0 // pred_check_branch
    %1210 = sbr.rel (0) target = $region21
  $region20: #{lstm_encoder_forward.1} parent=0 // pred_region
    _
  $region21: #{lstm_encoder_forward.1} parent=0 // pred_fallthru
    _
  // Predicated region
  $region22: #{lstm_encoder_forward.1} parent=0 // pred_check
    _
  $region23: #{lstm_encoder_forward.1} parent=0 // pred_check_branch
    %1212 = sbr.rel (0) target = $region25
  $region24: #{lstm_encoder_forward.1} parent=0 // pred_region
    _
  $region25: #{lstm_encoder_forward.1} parent=0 // pred_fallthru
    _
  // Predicated region
  $region26: #{lstm_encoder_forward.1} parent=0 // pred_check
    _
  $region27: #{lstm_encoder_forward.1} parent=0 // pred_check_branch
    %1214 = sbr.rel (0) target = $region29
  $region28: #{lstm_encoder_forward.1} parent=0 // pred_region
    _
  $region29: #{lstm_encoder_forward.1} parent=0 // pred_fallthru
    _
  // Predicated region
  $region30: #{lstm_encoder_forward.1} parent=0 // pred_check
    _
  $region31: #{lstm_encoder_forward.1} parent=0 // pred_check_branch
    %1216 = sbr.rel (0) target = $region33
  $region32: #{lstm_encoder_forward.1} parent=0 // pred_region
    _
  $region33: #{lstm_encoder_forward.1} parent=0 // pred_fallthru
    _
  // Predicated region
  $region34: #{lstm_encoder_forward.1} parent=0 // pred_check
    _
  $region35: #{lstm_encoder_forward.1} parent=0 // pred_check_branch
    %1218 = sbr.rel (0) target = $region37
  $region36: #{lstm_encoder_forward.1} parent=0 // pred_region
    _
  $region37: #{lstm_encoder_forward.1} parent=0 // pred_fallthru
    _
  // Predicated region
  $region38: #{lstm_encoder_forward.1} parent=0 // pred_check
    _
  $region39: #{lstm_encoder_forward.1} parent=0 // pred_check_branch
    %1220 = sbr.rel (0) target = $region41
  $region40: #{lstm_encoder_forward.1} parent=0 // pred_region
    _
  $region41: #{lstm_encoder_forward.1} parent=0 // pred_fallthru
    _

</llo_original>
